<compile_context>
chip_gen: v6e
topology: v6e:2x2x1
jax: 0.10.0
libtpu: 0.0.40
codegen_flags: <defaults>
</compile_context>

<pallas_src>
import jax
import jax.numpy as jnp
from jax.experimental import pallas as pl
from jax.experimental.pallas import tpu as pltpu


def _round_up(n, m):
    return (n + m - 1) // m * m


def mlp_kernel(x_ref,
               w0_ref, b0_ref,
               w1_ref, b1_ref,
               w2_ref, b2_ref,
               w3_ref, b3_ref,
               wo_ref, bo_ref,
               o_ref):
    # Layer 0: cast the f32 activation tile to the weight dtype *inside* the
    # kernel (no extra wrapper-side HBM pass), accumulate in f32 on the MXU.
    h = jnp.dot(x_ref[...].astype(w0_ref.dtype), w0_ref[...],
                preferred_element_type=jnp.float32)
    h = jnp.maximum(h + b0_ref[...], 0.0)

    # Hidden layers: Linear(hidden, hidden) + ReLU (+ Dropout(p=0) == identity).
    for w_ref, b_ref in ((w1_ref, b1_ref), (w2_ref, b2_ref), (w3_ref, b3_ref)):
        h = jnp.dot(h.astype(w_ref.dtype), w_ref[...],
                    preferred_element_type=jnp.float32)
        h = jnp.maximum(h + b_ref[...], 0.0)

    # Output head (reg_class == 'regression': no softmax).
    # MXU matmul against the lane-padded (hidden, 128) weight held in VMEM, then
    # slice back to the true output width before the HBM store so the output DMA
    # only moves output_size lanes (no 128x write amplification).
    out = jnp.dot(h.astype(wo_ref.dtype), wo_ref[...],
                  preferred_element_type=jnp.float32) + bo_ref[...]
    o_ref[...] = out[:, :o_ref.shape[1]].astype(o_ref.dtype)


def neural_network_forward(x, params, *, block_m=2048, compute_dtype=jnp.bfloat16):
    """Forward pass.

    x: (B, input_size) f32 — streamed untouched; cast to compute_dtype in-kernel.
    params: dict of pre-transposed weights (in, out) and biases (1, out), f32.
    block_m: target batch-tile rows per grid step (auto-capped for VMEM / cores).
    compute_dtype: jnp.bfloat16 (default; native MXU dtype on v5e/v6e/v7x) or
                   jnp.float32 when bit-exactness vs the reference is required.
                   Accumulation, bias-add and ReLU always stay f32.
    """
    B, input_size = x.shape
    hidden = params["w0"].shape[1]
    output_size = params["wo"].shape[1]

    # Lane-pad the output head to a multiple of 128 for the in-VMEM MXU matmul;
    # the kernel slices back to output_size before the HBM write-back.
    out_pad = _round_up(output_size, 128)
    wo = jnp.zeros((hidden, out_pad), jnp.float32).at[:, :output_size].set(params["wo"])
    bo = jnp.zeros((1, out_pad), jnp.float32).at[:, :output_size].set(params["bo"])

    # Weights in compute_dtype; biases stay f32.
    w0 = params["w0"].astype(compute_dtype)
    w1 = params["w1"].astype(compute_dtype)
    w2 = params["w2"].astype(compute_dtype)
    w3 = params["w3"].astype(compute_dtype)
    wo = wo.astype(compute_dtype)
    b0, b1, b2, b3 = (params[k].astype(jnp.float32) for k in ("b0", "b1", "b2", "b3"))

    # --- Batch tile size ----------------------------------------------------
    #  * multiple of 8 (sublane alignment)
    #  * >= 2 grid steps when possible (v7x: two TensorCores share the
    #    "parallel" axis; a single step would idle one core)
    #  * double-buffered input tiles capped at ~16 MiB so every generation
    #    (incl. v5e's 16 MiB scoped default, v7x's 64 MiB physical VMEM) fits
    #    comfortably once the limit below is raised.
    x_itemsize = x.dtype.itemsize
    tm_vmem_cap = max(8, (16 * 1024 * 1024) // (2 * input_size * x_itemsize))
    tm_two_steps = _round_up(pl.cdiv(B, 2), 8)
    tm = max(8, _round_up(min(block_m, tm_vmem_cap, tm_two_steps), 8))
    grid = (pl.cdiv(B, tm),)  # ragged last block: OOB rows are masked on store

    args = (x, w0, b0, w1, b1, w2, b2, w3, b3, wo, bo)

    def resident_spec(a):
        # Whole array, same block index every grid step -> stays VMEM-resident
        # (Pallas skips the re-DMA when the block index does not change).
        return pl.BlockSpec(a.shape, lambda i: (0,) * a.ndim)

    in_specs = [pl.BlockSpec((tm, input_size), lambda i: (i, 0))] + \
               [resident_spec(a) for a in args[1:]]

    # Rough VMEM need: x double buffer + output double buffer + (double-
    # buffered) resident weights/biases + f32 intermediates, with headroom.
    weight_bytes = sum(int(a.size) * a.dtype.itemsize for a in args[1:])
    est = (2 * tm * input_size * x_itemsize
           + 2 * tm * output_size * 4
           + 2 * weight_bytes
           + 4 * tm * max(hidden, out_pad) * 4)
    vmem_limit = int(min(max(est * 5 // 4, 24 * 1024 * 1024), 40 * 1024 * 1024))

    flops = 2 * B * (input_size * hidden + 3 * hidden * hidden + hidden * out_pad)
    bytes_accessed = int(x.size) * x_itemsize + B * output_size * 4 + weight_bytes

    return pl.pallas_call(
        mlp_kernel,
        out_shape=jax.ShapeDtypeStruct((B, output_size), jnp.float32),
        grid=grid,
        in_specs=in_specs,
        out_specs=pl.BlockSpec((tm, output_size), lambda i: (i, 0)),
        compiler_params=pltpu.CompilerParams(
            dimension_semantics=("parallel",),
            vmem_limit_bytes=vmem_limit),
        cost_estimate=pl.CostEstimate(
            flops=flops, transcendentals=0, bytes_accessed=bytes_accessed),
    )(*args)


def init_params(key, input_size, hidden_size, output_size):
    """Deterministic synthetic parameters; stored as (in, out) + (1, out)."""
    keys = jax.random.split(key, 10)

    def lin(kw, kb, fan_in, fan_out):
        # Mimic PyTorch's uniform(-1/sqrt(fan_in), 1/sqrt(fan_in)) init.
        bound = 1.0 / jnp.sqrt(jnp.float32(fan_in))
        w = jax.random.uniform(kw, (fan_in, fan_out), jnp.float32, -bound, bound)
        b = jax.random.uniform(kb, (1, fan_out), jnp.float32, -bound, bound)
        return w, b

    w0, b0 = lin(keys[0], keys[1], input_size, hidden_size)
    w1, b1 = lin(keys[2], keys[3], hidden_size, hidden_size)
    w2, b2 = lin(keys[4], keys[5], hidden_size, hidden_size)
    w3, b3 = lin(keys[6], keys[7], hidden_size, hidden_size)
    wo, bo = lin(keys[8], keys[9], hidden_size, output_size)
    return dict(w0=w0, b0=b0, w1=w1, b1=b1, w2=w2, b2=b2, w3=w3, b3=b3,
                wo=wo, bo=bo)


def reference_forward(x, p):
    h = jnp.maximum(x @ p["w0"] + p["b0"], 0.0)
    for w, b in ((p["w1"], p["b1"]), (p["w2"], p["b2"]), (p["w3"], p["b3"])):
        h = jnp.maximum(h @ w + b, 0.0)
    return h @ p["wo"] + p["bo"]


if __name__ == "__main__":
    # Small shapes consistent with the module's forward: (batch, input_size) MLP.
    # B=200 deliberately does not divide the batch tile -> exercises the ragged
    # last block (masked write-back) and a 2-step grid (both v7x cores used).
    B, INPUT_SIZE, HIDDEN_SIZE, OUTPUT_SIZE = 200, 256, 128, 1

    key = jax.random.PRNGKey(0)
    kx, kp = jax.random.split(key)
    x = jax.random.normal(kx, (B, INPUT_SIZE), jnp.float32)
    params = init_params(kp, INPUT_SIZE, HIDDEN_SIZE, OUTPUT_SIZE)

    ref = reference_forward(x, params)

    # f32 compute path (bit-accuracy check vs the reference).
    out_f32 = neural_network_forward(x, params, compute_dtype=jnp.float32)
    out_f32 = jax.block_until_ready(out_f32)
    assert out_f32.shape == (B, OUTPUT_SIZE)
    assert jnp.allclose(out_f32, ref, atol=1e-4, rtol=1e-4)

    # bf16 MXU path (default; f32 accumulation keeps it close to the reference).
    out_bf16 = neural_network_forward(x, params)  # compute_dtype=bf16 default
    out_bf16 = jax.block_until_ready(out_bf16)
    assert out_bf16.shape == (B, OUTPUT_SIZE)
    rel_err = jnp.max(jnp.abs(out_bf16 - ref)) / (jnp.max(jnp.abs(ref)) + 1e-6)
    assert rel_err < 0.1

    print("KERNEL_OK")
</pallas_src>

<mosaic_0001>
module attributes {stable_mosaic.version = 11 : i64} {
  func.func @mlp_kernel(%arg0: i32, %arg1: memref<104x256xf32, #tpu.memory_space<vmem>>, %arg2: memref<256x128xf32, #tpu.memory_space<vmem>>, %arg3: memref<1x128xf32, #tpu.memory_space<vmem>>, %arg4: memref<128x128xf32, #tpu.memory_space<vmem>>, %arg5: memref<1x128xf32, #tpu.memory_space<vmem>>, %arg6: memref<128x128xf32, #tpu.memory_space<vmem>>, %arg7: memref<1x128xf32, #tpu.memory_space<vmem>>, %arg8: memref<128x128xf32, #tpu.memory_space<vmem>>, %arg9: memref<1x128xf32, #tpu.memory_space<vmem>>, %arg10: memref<128x128xf32, #tpu.memory_space<vmem>>, %arg11: memref<1x128xf32, #tpu.memory_space<vmem>>, %arg12: memref<104x1xf32, #tpu.memory_space<vmem>>) attributes {dimension_semantics = [#tpu.dimension_semantics<parallel>], iteration_bounds = array<i64: 2>, scalar_prefetch = 0 : i64, scratch_operands = 0 : i64, tpu.core_type = #tpu.core_type<tc>, window_params = [{transform_indices = @transform_0, window_bounds = array<i64: 104, 256>}, {pipeline_mode = #tpu.pipeline_mode<synchronous>, transform_indices = @transform_1, window_bounds = array<i64: 256, 128>}, {pipeline_mode = #tpu.pipeline_mode<synchronous>, transform_indices = @transform_2, window_bounds = array<i64: 1, 128>}, {pipeline_mode = #tpu.pipeline_mode<synchronous>, transform_indices = @transform_3, window_bounds = array<i64: 128, 128>}, {pipeline_mode = #tpu.pipeline_mode<synchronous>, transform_indices = @transform_4, window_bounds = array<i64: 1, 128>}, {pipeline_mode = #tpu.pipeline_mode<synchronous>, transform_indices = @transform_5, window_bounds = array<i64: 128, 128>}, {pipeline_mode = #tpu.pipeline_mode<synchronous>, transform_indices = @transform_6, window_bounds = array<i64: 1, 128>}, {pipeline_mode = #tpu.pipeline_mode<synchronous>, transform_indices = @transform_7, window_bounds = array<i64: 128, 128>}, {pipeline_mode = #tpu.pipeline_mode<synchronous>, transform_indices = @transform_8, window_bounds = array<i64: 1, 128>}, {pipeline_mode = #tpu.pipeline_mode<synchronous>, transform_indices = @transform_9, window_bounds = array<i64: 128, 128>}, {pipeline_mode = #tpu.pipeline_mode<synchronous>, transform_indices = @transform_10, window_bounds = array<i64: 1, 128>}, {transform_indices = @transform_11, window_bounds = array<i64: 104, 1>}]} {
    %c0 = arith.constant 0 : index
    %c0_0 = arith.constant 0 : index
    %0 = vector.load %arg1[%c0, %c0_0] : memref<104x256xf32, #tpu.memory_space<vmem>>, vector<104x256xf32>
    %c0_1 = arith.constant 0 : index
    %c0_2 = arith.constant 0 : index
    %1 = vector.load %arg2[%c0_1, %c0_2] : memref<256x128xf32, #tpu.memory_space<vmem>>, vector<256x128xf32>
    %cst = arith.constant dense<0.000000e+00> : vector<104x128xf32>
    %2 = tpu.matmul %0, %1, %cst {dimension_numbers = #tpu.dot_dimension_numbers<[1], [0], [0], [1], [0, 0, 1, 1], [], []>} : vector<104x256xf32>, vector<256x128xf32>, vector<104x128xf32> -> vector<104x128xf32>
    %c0_3 = arith.constant 0 : index
    %c0_4 = arith.constant 0 : index
    %3 = vector.load %arg3[%c0_3, %c0_4] : memref<1x128xf32, #tpu.memory_space<vmem>>, vector<1x128xf32>
    %4 = vector.broadcast %3 : vector<1x128xf32> to vector<104x128xf32>
    %5 = arith.addf %2, %4 : vector<104x128xf32>
    %cst_5 = arith.constant 0.000000e+00 : f32
    %6 = vector.broadcast %cst_5 : f32 to vector<104x128xf32>
    %7 = arith.maximumf %5, %6 : vector<104x128xf32>
    %c0_6 = arith.constant 0 : index
    %c0_7 = arith.constant 0 : index
    %8 = vector.load %arg4[%c0_6, %c0_7] : memref<128x128xf32, #tpu.memory_space<vmem>>, vector<128x128xf32>
    %cst_8 = arith.constant dense<0.000000e+00> : vector<104x128xf32>
    %9 = tpu.matmul %7, %8, %cst_8 {dimension_numbers = #tpu.dot_dimension_numbers<[1], [0], [0], [1], [0, 0, 1, 1], [], []>} : vector<104x128xf32>, vector<128x128xf32>, vector<104x128xf32> -> vector<104x128xf32>
    %c0_9 = arith.constant 0 : index
    %c0_10 = arith.constant 0 : index
    %10 = vector.load %arg5[%c0_9, %c0_10] : memref<1x128xf32, #tpu.memory_space<vmem>>, vector<1x128xf32>
    %11 = vector.broadcast %10 : vector<1x128xf32> to vector<104x128xf32>
    %12 = arith.addf %9, %11 : vector<104x128xf32>
    %cst_11 = arith.constant 0.000000e+00 : f32
    %13 = vector.broadcast %cst_11 : f32 to vector<104x128xf32>
    %14 = arith.maximumf %12, %13 : vector<104x128xf32>
    %c0_12 = arith.constant 0 : index
    %c0_13 = arith.constant 0 : index
    %15 = vector.load %arg6[%c0_12, %c0_13] : memref<128x128xf32, #tpu.memory_space<vmem>>, vector<128x128xf32>
    %cst_14 = arith.constant dense<0.000000e+00> : vector<104x128xf32>
    %16 = tpu.matmul %14, %15, %cst_14 {dimension_numbers = #tpu.dot_dimension_numbers<[1], [0], [0], [1], [0, 0, 1, 1], [], []>} : vector<104x128xf32>, vector<128x128xf32>, vector<104x128xf32> -> vector<104x128xf32>
    %c0_15 = arith.constant 0 : index
    %c0_16 = arith.constant 0 : index
    %17 = vector.load %arg7[%c0_15, %c0_16] : memref<1x128xf32, #tpu.memory_space<vmem>>, vector<1x128xf32>
    %18 = vector.broadcast %17 : vector<1x128xf32> to vector<104x128xf32>
    %19 = arith.addf %16, %18 : vector<104x128xf32>
    %cst_17 = arith.constant 0.000000e+00 : f32
    %20 = vector.broadcast %cst_17 : f32 to vector<104x128xf32>
    %21 = arith.maximumf %19, %20 : vector<104x128xf32>
    %c0_18 = arith.constant 0 : index
    %c0_19 = arith.constant 0 : index
    %22 = vector.load %arg8[%c0_18, %c0_19] : memref<128x128xf32, #tpu.memory_space<vmem>>, vector<128x128xf32>
    %cst_20 = arith.constant dense<0.000000e+00> : vector<104x128xf32>
    %23 = tpu.matmul %21, %22, %cst_20 {dimension_numbers = #tpu.dot_dimension_numbers<[1], [0], [0], [1], [0, 0, 1, 1], [], []>} : vector<104x128xf32>, vector<128x128xf32>, vector<104x128xf32> -> vector<104x128xf32>
    %c0_21 = arith.constant 0 : index
    %c0_22 = arith.constant 0 : index
    %24 = vector.load %arg9[%c0_21, %c0_22] : memref<1x128xf32, #tpu.memory_space<vmem>>, vector<1x128xf32>
    %25 = vector.broadcast %24 : vector<1x128xf32> to vector<104x128xf32>
    %26 = arith.addf %23, %25 : vector<104x128xf32>
    %cst_23 = arith.constant 0.000000e+00 : f32
    %27 = vector.broadcast %cst_23 : f32 to vector<104x128xf32>
    %28 = arith.maximumf %26, %27 : vector<104x128xf32>
    %c0_24 = arith.constant 0 : index
    %c0_25 = arith.constant 0 : index
    %29 = vector.load %arg10[%c0_24, %c0_25] : memref<128x128xf32, #tpu.memory_space<vmem>>, vector<128x128xf32>
    %cst_26 = arith.constant dense<0.000000e+00> : vector<104x128xf32>
    %30 = tpu.matmul %28, %29, %cst_26 {dimension_numbers = #tpu.dot_dimension_numbers<[1], [0], [0], [1], [0, 0, 1, 1], [], []>} : vector<104x128xf32>, vector<128x128xf32>, vector<104x128xf32> -> vector<104x128xf32>
    %c0_27 = arith.constant 0 : index
    %c0_28 = arith.constant 0 : index
    %31 = vector.load %arg11[%c0_27, %c0_28] : memref<1x128xf32, #tpu.memory_space<vmem>>, vector<1x128xf32>
    %32 = vector.broadcast %31 : vector<1x128xf32> to vector<104x128xf32>
    %33 = arith.addf %30, %32 : vector<104x128xf32>
    %34 = vector.extract_strided_slice %33 {offsets = [0, 0], sizes = [104, 1], strides = [1, 1]} : vector<104x128xf32> to vector<104x1xf32>
    %c0_29 = arith.constant 0 : index
    %c0_30 = arith.constant 0 : index
    %35 = vector.load %arg12[%c0_29, %c0_30] : memref<104x1xf32, #tpu.memory_space<vmem>>, vector<104x1xf32>
    tpu.vector_store %arg12[%c0_29, %c0_30], %34 {strides = array<i32>} : memref<104x1xf32, #tpu.memory_space<vmem>>, vector<104x1xf32>,
    return
  }
  func.func @transform_0(%arg0: i32) -> (i32, i32) {
    %c0_i32 = arith.constant 0 : i32
    %c0_i32_0 = arith.constant 0 : i32
    return %arg0, %c0_i32 : i32, i32
  }
  func.func @transform_1(%arg0: i32) -> (i32, i32) {
    %c0_i32 = arith.constant 0 : i32
    %c0_i32_0 = arith.constant 0 : i32
    %c0_i32_1 = arith.constant 0 : i32
    return %c0_i32, %c0_i32_0 : i32, i32
  }
  func.func @transform_2(%arg0: i32) -> (i32, i32) {
    %c0_i32 = arith.constant 0 : i32
    %c0_i32_0 = arith.constant 0 : i32
    %c0_i32_1 = arith.constant 0 : i32
    return %c0_i32, %c0_i32_0 : i32, i32
  }
  func.func @transform_3(%arg0: i32) -> (i32, i32) {
    %c0_i32 = arith.constant 0 : i32
    %c0_i32_0 = arith.constant 0 : i32
    %c0_i32_1 = arith.constant 0 : i32
    return %c0_i32, %c0_i32_0 : i32, i32
  }
  func.func @transform_4(%arg0: i32) -> (i32, i32) {
    %c0_i32 = arith.constant 0 : i32
    %c0_i32_0 = arith.constant 0 : i32
    %c0_i32_1 = arith.constant 0 : i32
    return %c0_i32, %c0_i32_0 : i32, i32
  }
  func.func @transform_5(%arg0: i32) -> (i32, i32) {
    %c0_i32 = arith.constant 0 : i32
    %c0_i32_0 = arith.constant 0 : i32
    %c0_i32_1 = arith.constant 0 : i32
    return %c0_i32, %c0_i32_0 : i32, i32
  }
  func.func @transform_6(%arg0: i32) -> (i32, i32) {
    %c0_i32 = arith.constant 0 : i32
    %c0_i32_0 = arith.constant 0 : i32
    %c0_i32_1 = arith.constant 0 : i32
    return %c0_i32, %c0_i32_0 : i32, i32
  }
  func.func @transform_7(%arg0: i32) -> (i32, i32) {
    %c0_i32 = arith.constant 0 : i32
    %c0_i32_0 = arith.constant 0 : i32
    %c0_i32_1 = arith.constant 0 : i32
    return %c0_i32, %c0_i32_0 : i32, i32
  }
  func.func @transform_8(%arg0: i32) -> (i32, i32) {
    %c0_i32 = arith.constant 0 : i32
    %c0_i32_0 = arith.constant 0 : i32
    %c0_i32_1 = arith.constant 0 : i32
    return %c0_i32, %c0_i32_0 : i32, i32
  }
  func.func @transform_9(%arg0: i32) -> (i32, i32) {
    %c0_i32 = arith.constant 0 : i32
    %c0_i32_0 = arith.constant 0 : i32
    %c0_i32_1 = arith.constant 0 : i32
    return %c0_i32, %c0_i32_0 : i32, i32
  }
  func.func @transform_10(%arg0: i32) -> (i32, i32) {
    %c0_i32 = arith.constant 0 : i32
    %c0_i32_0 = arith.constant 0 : i32
    %c0_i32_1 = arith.constant 0 : i32
    return %c0_i32, %c0_i32_0 : i32, i32
  }
  func.func @transform_11(%arg0: i32) -> (i32, i32) {
    %c0_i32 = arith.constant 0 : i32
    %c0_i32_0 = arith.constant 0 : i32
    return %arg0, %c0_i32 : i32, i32
  }
}

</mosaic_0001>

<llo_original>
// kernel: tpu_custom_call.1
$region0: #{tpu_custom_call.1}
  #allocation0 [shape = 'u32[]', space=smem, size = 0x4, offset = 0x4, fixed_abs, tag = 'smem constant byte address 0x4 - core index']
  #allocation1 [shape = 'u32[144,128]{1,0:T(1,128)}', space=vmem, size = 0x12000, scoped, tag = 'internal scratch']
  %s0 = inlined_call_operand.hbm [shape: f32[200,256], index: 0, kind: input, shape index: {}]
  %s1 = inlined_call_operand.hbm [shape: f32[256,128], index: 1, kind: input, shape index: {}]
  %s2 = inlined_call_operand.vmem [shape: f32[1,128], index: 2, kind: input, shape index: {}]
  %s3 = inlined_call_operand.hbm [shape: f32[128,128], index: 3, kind: input, shape index: {}]
  %s4 = inlined_call_operand.vmem [shape: f32[1,128], index: 4, kind: input, shape index: {}]
  %s5 = inlined_call_operand.hbm [shape: f32[128,128], index: 5, kind: input, shape index: {}]
  %s6 = inlined_call_operand.vmem [shape: f32[1,128], index: 6, kind: input, shape index: {}]
  %s7 = inlined_call_operand.hbm [shape: f32[128,128], index: 7, kind: input, shape index: {}]
  %s8 = inlined_call_operand.vmem [shape: f32[1,128], index: 8, kind: input, shape index: {}]
  %s9 = inlined_call_operand.hbm [shape: f32[128,128], index: 9, kind: input, shape index: {}]
  %s10 = inlined_call_operand.vmem [shape: f32[1,128], index: 10, kind: input, shape index: {}]
  %s11 = inlined_call_operand.vmem [shape: f32[200,1], index: 11, kind: output, shape index: {}]
  %s12 = sld [smem:[#allocation0]]
  $region149: #{tpu_custom_call.1} parent=0
    _
  %s14 = ssub.s32 1, %s12
  %s15 = scalar_select 0, %s14, %s12
  $region1: #{tpu_custom_call.1} parent=0
    #allocation2 [shape = 'u8[212992]{0}', space=vmem, size = 0x34000, scoped, tag = 'input window, operand 0']
    #allocation3 [shape = 's32[2]{0}', space=sflag, size = 0x8, scoped, tag = 'scoped memory for tpu_custom_call.1']
    #allocation4 [shape = 'u8[131072]{0}', space=vmem, size = 0x20000, scoped, tag = 'input window, operand 1, single buffered']
    #allocation5 [shape = 's32[1]{0}', space=sflag, size = 0x4, scoped, tag = 'scoped memory for tpu_custom_call.1']
    #allocation6 [shape = 'u8[65536]{0}', space=vmem, size = 0x10000, scoped, tag = 'input window, operand 3, single buffered']
    #allocation7 [shape = 'u8[65536]{0}', space=vmem, size = 0x10000, scoped, tag = 'input window, operand 5, single buffered']
    #allocation8 [shape = 's32[1]{0}', space=sflag, size = 0x4, scoped, tag = 'scoped memory for tpu_custom_call.1']
    #allocation9 [shape = 'u8[65536]{0}', space=vmem, size = 0x10000, scoped, tag = 'input window, operand 7, single buffered']
    #allocation10 [shape = 'u8[65536]{0}', space=vmem, size = 0x10000, scoped, tag = 'input window, operand 9, single buffered']
    #allocation11 [shape = 's32[1]{0}', space=sflag, size = 0x4, scoped, tag = 'scoped memory for tpu_custom_call.1']
    #allocation12 [shape = 'u8[106496]{0}', space=vmem, size = 0x1a000, scoped, tag = 'output window, operand 0']
    %16 = vsyncpa [#allocation3], 0
    %s17 = scalar_lea.sflag [#allocation3], 1
    %18 = vsyncpa %s17, 0
    %19 = vsyncpa [#allocation5], 0
    %20 = vsyncpa [#allocation8], 0
    %21 = vsyncpa [#allocation11], 0
    loop: start=0, step=1, limit=4
    $region2: #{tpu_custom_call.1} parent=1 // loop_pre_header
      _
    $region3: #{tpu_custom_call.1} parent=1 // loop_header
      %s23 = sphi 0, %s27
      %p24 = scmp.ge.s32.totalorder %s23, 4
      %s33 = sphi 0, %s35
      %s36 = sphi 0, %s33
      %s37 = sphi 0, %s36
      %s53 = sphi 0, %s37
      %s57 = sphi 0, %s57
      %s59 = sphi 0, %s57
      %s60 = sphi 0, %s59
      %s74 = sphi 0, %s60
      %s78 = sphi 0, %s78
      %s80 = sphi 0, %s78
      %s81 = sphi 0, %s80
      %s95 = sphi 0, %s81
      %s99 = sphi 0, %s99
      %s101 = sphi 0, %s99
      %s102 = sphi 0, %s101
      %s116 = sphi 0, %s102
      %s120 = sphi 0, %s120
      %s122 = sphi 0, %s120
      %s123 = sphi 0, %s122
      %s137 = sphi 0, %s123
      %s141 = sphi 0, %s141
      %s143 = sphi 0, %s141
      %s144 = sphi 0, %s143
      %s158 = sphi 0, %s144
      %s162 = sphi 0, %s162
      %s164 = sphi 0, %s162
      %s165 = sphi 0, %s164
      %s179 = sphi 0, %s165
      %s183 = sphi 0, %s183
      %s185 = sphi 0, %s183
      %s186 = sphi 0, %s185
      %s200 = sphi 0, %s186
      %s204 = sphi 0, %s204
      %s206 = sphi 0, %s204
      %s207 = sphi 0, %s206
      %s221 = sphi 0, %s207
      %s225 = sphi 0, %s225
      %s227 = sphi 0, %s225
      %s228 = sphi 0, %s227
      %s242 = sphi 0, %s228
      %s246 = sphi 0, %s246
      %s248 = sphi 0, %s246
      %s249 = sphi 0, %s248
      %s263 = sphi 0, %s249
      %s269 = sphi 0, %s271
      %s272 = sphi 0, %s269
      %s273 = sphi 0, %s272
      %s289 = sphi 0, %s273
    $region4: #{tpu_custom_call.1} parent=1 // loop_header_branch
      %26 = sbr.rel (%p24) target = $region8
    $region5: #{tpu_custom_call.1} parent=1 // loop_body
      %s28 = ssub.s32 %s23, 1
      %s29 = ssub.s32 %s23, 2
      %s30 = sadd.s32 %s23, 1
      %s31 = ssub.s32 %s23, %s30
      %p32 = scmp.eq.s32.totalorder %s31, 0
      %s34 = sadd.s32 %s33, 1
      %s35 = scalar_select %p32, %s33, %s34
      %p38 = pneg %p32
      %p39 = scmp.eq.s32.totalorder %s23, 1
      %p40 = por %p38, %p39
      %p41 = scmp.ne.s32.totalorder %s33, %s36
      %p42 = scmp.eq.s32.totalorder %s23, 0
      %p43 = por %p41, %p42
      %p44 = scmp.ne.s32.totalorder %s33, %s36
      %p45 = scmp.eq.s32.totalorder %s28, 1
      %p46 = por %p44, %p45
      %p47 = scmp.ne.s32.totalorder %s36, %s37
      %p48 = scmp.eq.s32.totalorder %s28, 0
      %p49 = por %p47, %p48
      %p50 = scmp.ne.s32.totalorder %s36, %s37
      %p51 = scmp.eq.s32.totalorder %s29, 1
      %p52 = por %p50, %p51
      %p54 = scmp.ne.s32.totalorder %s37, %s53
      %p55 = scmp.eq.s32.totalorder %s29, 0
      %p56 = por %p54, %p55
      %s58 = sadd.s32 %s57, 1
      %p61 = scmp.eq.s32.totalorder %s23, 1
      %p62 = scmp.ne.s32.totalorder %s57, %s59
      %p63 = scmp.eq.s32.totalorder %s23, 0
      %p64 = por %p62, %p63
      %p65 = scmp.ne.s32.totalorder %s57, %s59
      %p66 = scmp.eq.s32.totalorder %s28, 1
      %p67 = por %p65, %p66
      %p68 = scmp.ne.s32.totalorder %s59, %s60
      %p69 = scmp.eq.s32.totalorder %s28, 0
      %p70 = por %p68, %p69
      %p71 = scmp.ne.s32.totalorder %s59, %s60
      %p72 = scmp.eq.s32.totalorder %s29, 1
      %p73 = por %p71, %p72
      %p75 = scmp.ne.s32.totalorder %s60, %s74
      %p76 = scmp.eq.s32.totalorder %s29, 0
      %p77 = por %p75, %p76
      %s79 = sadd.s32 %s78, 1
      %p82 = scmp.eq.s32.totalorder %s23, 1
      %p83 = scmp.ne.s32.totalorder %s78, %s80
      %p84 = scmp.eq.s32.totalorder %s23, 0
      %p85 = por %p83, %p84
      %p86 = scmp.ne.s32.totalorder %s78, %s80
      %p87 = scmp.eq.s32.totalorder %s28, 1
      %p88 = por %p86, %p87
      %p89 = scmp.ne.s32.totalorder %s80, %s81
      %p90 = scmp.eq.s32.totalorder %s28, 0
      %p91 = por %p89, %p90
      %p92 = scmp.ne.s32.totalorder %s80, %s81
      %p93 = scmp.eq.s32.totalorder %s29, 1
      %p94 = por %p92, %p93
      %p96 = scmp.ne.s32.totalorder %s81, %s95
      %p97 = scmp.eq.s32.totalorder %s29, 0
      %p98 = por %p96, %p97
      %s100 = sadd.s32 %s99, 1
      %p103 = scmp.eq.s32.totalorder %s23, 1
      %p104 = scmp.ne.s32.totalorder %s99, %s101
      %p105 = scmp.eq.s32.totalorder %s23, 0
      %p106 = por %p104, %p105
      %p107 = scmp.ne.s32.totalorder %s99, %s101
      %p108 = scmp.eq.s32.totalorder %s28, 1
      %p109 = por %p107, %p108
      %p110 = scmp.ne.s32.totalorder %s101, %s102
      %p111 = scmp.eq.s32.totalorder %s28, 0
      %p112 = por %p110, %p111
      %p113 = scmp.ne.s32.totalorder %s101, %s102
      %p114 = scmp.eq.s32.totalorder %s29, 1
      %p115 = por %p113, %p114
      %p117 = scmp.ne.s32.totalorder %s102, %s116
      %p118 = scmp.eq.s32.totalorder %s29, 0
      %p119 = por %p117, %p118
      %s121 = sadd.s32 %s120, 1
      %p124 = scmp.eq.s32.totalorder %s23, 1
      %p125 = scmp.ne.s32.totalorder %s120, %s122
      %p126 = scmp.eq.s32.totalorder %s23, 0
      %p127 = por %p125, %p126
      %p128 = scmp.ne.s32.totalorder %s120, %s122
      %p129 = scmp.eq.s32.totalorder %s28, 1
      %p130 = por %p128, %p129
      %p131 = scmp.ne.s32.totalorder %s122, %s123
      %p132 = scmp.eq.s32.totalorder %s28, 0
      %p133 = por %p131, %p132
      %p134 = scmp.ne.s32.totalorder %s122, %s123
      %p135 = scmp.eq.s32.totalorder %s29, 1
      %p136 = por %p134, %p135
      %p138 = scmp.ne.s32.totalorder %s123, %s137
      %p139 = scmp.eq.s32.totalorder %s29, 0
      %p140 = por %p138, %p139
      %s142 = sadd.s32 %s141, 1
      %p145 = scmp.eq.s32.totalorder %s23, 1
      %p146 = scmp.ne.s32.totalorder %s141, %s143
      %p147 = scmp.eq.s32.totalorder %s23, 0
      %p148 = por %p146, %p147
      %p149 = scmp.ne.s32.totalorder %s141, %s143
      %p150 = scmp.eq.s32.totalorder %s28, 1
      %p151 = por %p149, %p150
      %p152 = scmp.ne.s32.totalorder %s143, %s144
      %p153 = scmp.eq.s32.totalorder %s28, 0
      %p154 = por %p152, %p153
      %p155 = scmp.ne.s32.totalorder %s143, %s144
      %p156 = scmp.eq.s32.totalorder %s29, 1
      %p157 = por %p155, %p156
      %p159 = scmp.ne.s32.totalorder %s144, %s158
      %p160 = scmp.eq.s32.totalorder %s29, 0
      %p161 = por %p159, %p160
      %s163 = sadd.s32 %s162, 1
      %p166 = scmp.eq.s32.totalorder %s23, 1
      %p167 = scmp.ne.s32.totalorder %s162, %s164
      %p168 = scmp.eq.s32.totalorder %s23, 0
      %p169 = por %p167, %p168
      %p170 = scmp.ne.s32.totalorder %s162, %s164
      %p171 = scmp.eq.s32.totalorder %s28, 1
      %p172 = por %p170, %p171
      %p173 = scmp.ne.s32.totalorder %s164, %s165
      %p174 = scmp.eq.s32.totalorder %s28, 0
      %p175 = por %p173, %p174
      %p176 = scmp.ne.s32.totalorder %s164, %s165
      %p177 = scmp.eq.s32.totalorder %s29, 1
      %p178 = por %p176, %p177
      %p180 = scmp.ne.s32.totalorder %s165, %s179
      %p181 = scmp.eq.s32.totalorder %s29, 0
      %p182 = por %p180, %p181
      %s184 = sadd.s32 %s183, 1
      %p187 = scmp.eq.s32.totalorder %s23, 1
      %p188 = scmp.ne.s32.totalorder %s183, %s185
      %p189 = scmp.eq.s32.totalorder %s23, 0
      %p190 = por %p188, %p189
      %p191 = scmp.ne.s32.totalorder %s183, %s185
      %p192 = scmp.eq.s32.totalorder %s28, 1
      %p193 = por %p191, %p192
      %p194 = scmp.ne.s32.totalorder %s185, %s186
      %p195 = scmp.eq.s32.totalorder %s28, 0
      %p196 = por %p194, %p195
      %p197 = scmp.ne.s32.totalorder %s185, %s186
      %p198 = scmp.eq.s32.totalorder %s29, 1
      %p199 = por %p197, %p198
      %p201 = scmp.ne.s32.totalorder %s186, %s200
      %p202 = scmp.eq.s32.totalorder %s29, 0
      %p203 = por %p201, %p202
      %s205 = sadd.s32 %s204, 1
      %p208 = scmp.eq.s32.totalorder %s23, 1
      %p209 = scmp.ne.s32.totalorder %s204, %s206
      %p210 = scmp.eq.s32.totalorder %s23, 0
      %p211 = por %p209, %p210
      %p212 = scmp.ne.s32.totalorder %s204, %s206
      %p213 = scmp.eq.s32.totalorder %s28, 1
      %p214 = por %p212, %p213
      %p215 = scmp.ne.s32.totalorder %s206, %s207
      %p216 = scmp.eq.s32.totalorder %s28, 0
      %p217 = por %p215, %p216
      %p218 = scmp.ne.s32.totalorder %s206, %s207
      %p219 = scmp.eq.s32.totalorder %s29, 1
      %p220 = por %p218, %p219
      %p222 = scmp.ne.s32.totalorder %s207, %s221
      %p223 = scmp.eq.s32.totalorder %s29, 0
      %p224 = por %p222, %p223
      %s226 = sadd.s32 %s225, 1
      %p229 = scmp.eq.s32.totalorder %s23, 1
      %p230 = scmp.ne.s32.totalorder %s225, %s227
      %p231 = scmp.eq.s32.totalorder %s23, 0
      %p232 = por %p230, %p231
      %p233 = scmp.ne.s32.totalorder %s225, %s227
      %p234 = scmp.eq.s32.totalorder %s28, 1
      %p235 = por %p233, %p234
      %p236 = scmp.ne.s32.totalorder %s227, %s228
      %p237 = scmp.eq.s32.totalorder %s28, 0
      %p238 = por %p236, %p237
      %p239 = scmp.ne.s32.totalorder %s227, %s228
      %p240 = scmp.eq.s32.totalorder %s29, 1
      %p241 = por %p239, %p240
      %p243 = scmp.ne.s32.totalorder %s228, %s242
      %p244 = scmp.eq.s32.totalorder %s29, 0
      %p245 = por %p243, %p244
      %s247 = sadd.s32 %s246, 1
      %p250 = scmp.eq.s32.totalorder %s23, 1
      %p251 = scmp.ne.s32.totalorder %s246, %s248
      %p252 = scmp.eq.s32.totalorder %s23, 0
      %p253 = por %p251, %p252
      %p254 = scmp.ne.s32.totalorder %s246, %s248
      %p255 = scmp.eq.s32.totalorder %s28, 1
      %p256 = por %p254, %p255
      %p257 = scmp.ne.s32.totalorder %s248, %s249
      %p258 = scmp.eq.s32.totalorder %s28, 0
      %p259 = por %p257, %p258
      %p260 = scmp.ne.s32.totalorder %s248, %s249
      %p261 = scmp.eq.s32.totalorder %s29, 1
      %p262 = por %p260, %p261
      %p264 = scmp.ne.s32.totalorder %s249, %s263
      %p265 = scmp.eq.s32.totalorder %s29, 0
      %p266 = por %p264, %p265
      %s267 = ssub.s32 %s23, %s30
      %p268 = scmp.eq.s32.totalorder %s267, 0
      %s270 = sadd.s32 %s269, 1
      %s271 = scalar_select %p268, %s269, %s270
      %p274 = pneg %p268
      %p275 = scmp.eq.s32.totalorder %s23, 1
      %p276 = por %p274, %p275
      %p277 = scmp.ne.s32.totalorder %s269, %s272
      %p278 = scmp.eq.s32.totalorder %s23, 0
      %p279 = por %p277, %p278
      %p280 = scmp.ne.s32.totalorder %s269, %s272
      %p281 = scmp.eq.s32.totalorder %s28, 1
      %p282 = por %p280, %p281
      %p283 = scmp.ne.s32.totalorder %s272, %s273
      %p284 = scmp.eq.s32.totalorder %s28, 0
      %p285 = por %p283, %p284
      %p286 = scmp.ne.s32.totalorder %s272, %s273
      %p287 = scmp.eq.s32.totalorder %s29, 1
      %p288 = por %p286, %p287
      %p290 = scmp.ne.s32.totalorder %s273, %s289
      %p291 = scmp.eq.s32.totalorder %s29, 0
      %p292 = por %p290, %p291
      %p293 = scmp.le.s32.totalorder 1, %s23
      %p294 = scmp.lt.s32.totalorder %s23, 3
      %p295 = pnand %p293, %p294
      %p296 = pneg %p295
      // Predicated region
      $region9: #{tpu_custom_call.1} parent=5 // pred_check
        _
      $region10: #{tpu_custom_call.1} parent=5 // pred_check_branch
        %298 = sbr.rel (%p295) target = $region12
      $region11: #{tpu_custom_call.1} parent=5 // pred_region
        %s299 = ssub.s32 %s23, 1
        // Predicated region
        $region13: #{tpu_custom_call.1} parent=11 // pred_check
          %p300 = pneg %p70
        $region14: #{tpu_custom_call.1} parent=11 // pred_check_branch
          %302 = sbr.rel (%p300) target = $region16
        $region15: #{tpu_custom_call.1} parent=11 // pred_region
          %s304 = ssub.s32 4096, 4096
          %305 = vsyncadd [#allocation5], %s304
          %s306 = sshll.u32 [#allocation4], 4
          %s307 = int_to_ptr.vmem [resolvable:$true] %s306
          %312 = dma.hbm_to_vmem [thread:$0]  %s1, 4096, %s307, [#allocation5], 128, 128, 8
        $region16: #{tpu_custom_call.1} parent=11 // pred_fallthru
          _
        // Predicated region
        $region17: #{tpu_custom_call.1} parent=11 // pred_check
          %p313 = pneg %p91
        $region18: #{tpu_custom_call.1} parent=11 // pred_check_branch
          %315 = sbr.rel (%p313) target = $region20
        $region19: #{tpu_custom_call.1} parent=11 // pred_region
          _
        $region20: #{tpu_custom_call.1} parent=11 // pred_fallthru
          _
        // Predicated region
        $region21: #{tpu_custom_call.1} parent=11 // pred_check
          %p316 = pneg %p112
        $region22: #{tpu_custom_call.1} parent=11 // pred_check_branch
          %318 = sbr.rel (%p316) target = $region24
        $region23: #{tpu_custom_call.1} parent=11 // pred_region
          %s320 = ssub.s32 2048, 2048
          %321 = vsyncadd [#allocation5], %s320
          %s322 = sshll.u32 [#allocation6], 4
          %s323 = int_to_ptr.vmem [resolvable:$true] %s322
          %328 = dma.hbm_to_vmem [thread:$0]  %s3, 2048, %s323, [#allocation5], 128, 128, 8
        $region24: #{tpu_custom_call.1} parent=11 // pred_fallthru
          _
        // Predicated region
        $region25: #{tpu_custom_call.1} parent=11 // pred_check
          %p329 = pneg %p133
        $region26: #{tpu_custom_call.1} parent=11 // pred_check_branch
          %331 = sbr.rel (%p329) target = $region28
        $region27: #{tpu_custom_call.1} parent=11 // pred_region
          _
        $region28: #{tpu_custom_call.1} parent=11 // pred_fallthru
          _
        // Predicated region
        $region29: #{tpu_custom_call.1} parent=11 // pred_check
          %p332 = pneg %p154
        $region30: #{tpu_custom_call.1} parent=11 // pred_check_branch
          %334 = sbr.rel (%p332) target = $region32
        $region31: #{tpu_custom_call.1} parent=11 // pred_region
          %s336 = ssub.s32 2048, 2048
          %337 = vsyncadd [#allocation8], %s336
          %s338 = sshll.u32 [#allocation7], 4
          %s339 = int_to_ptr.vmem [resolvable:$true] %s338
          %344 = dma.hbm_to_vmem [thread:$0]  %s5, 2048, %s339, [#allocation8], 128, 128, 8
        $region32: #{tpu_custom_call.1} parent=11 // pred_fallthru
          _
        // Predicated region
        $region33: #{tpu_custom_call.1} parent=11 // pred_check
          %p345 = pneg %p175
        $region34: #{tpu_custom_call.1} parent=11 // pred_check_branch
          %347 = sbr.rel (%p345) target = $region36
        $region35: #{tpu_custom_call.1} parent=11 // pred_region
          _
        $region36: #{tpu_custom_call.1} parent=11 // pred_fallthru
          _
        // Predicated region
        $region37: #{tpu_custom_call.1} parent=11 // pred_check
          %p348 = pneg %p196
        $region38: #{tpu_custom_call.1} parent=11 // pred_check_branch
          %350 = sbr.rel (%p348) target = $region40
        $region39: #{tpu_custom_call.1} parent=11 // pred_region
          %s352 = ssub.s32 2048, 2048
          %353 = vsyncadd [#allocation8], %s352
          %s354 = sshll.u32 [#allocation9], 4
          %s355 = int_to_ptr.vmem [resolvable:$true] %s354
          %360 = dma.hbm_to_vmem [thread:$0]  %s7, 2048, %s355, [#allocation8], 128, 128, 8
        $region40: #{tpu_custom_call.1} parent=11 // pred_fallthru
          _
        // Predicated region
        $region41: #{tpu_custom_call.1} parent=11 // pred_check
          %p361 = pneg %p217
        $region42: #{tpu_custom_call.1} parent=11 // pred_check_branch
          %363 = sbr.rel (%p361) target = $region44
        $region43: #{tpu_custom_call.1} parent=11 // pred_region
          _
        $region44: #{tpu_custom_call.1} parent=11 // pred_fallthru
          _
        // Predicated region
        $region45: #{tpu_custom_call.1} parent=11 // pred_check
          %p364 = pneg %p238
        $region46: #{tpu_custom_call.1} parent=11 // pred_check_branch
          %366 = sbr.rel (%p364) target = $region48
        $region47: #{tpu_custom_call.1} parent=11 // pred_region
          %s368 = ssub.s32 2048, 2048
          %369 = vsyncadd [#allocation11], %s368
          %s370 = sshll.u32 [#allocation10], 4
          %s371 = int_to_ptr.vmem [resolvable:$true] %s370
          %376 = dma.hbm_to_vmem [thread:$0]  %s9, 2048, %s371, [#allocation11], 128, 128, 8
        $region48: #{tpu_custom_call.1} parent=11 // pred_fallthru
          _
        // Predicated region
        $region49: #{tpu_custom_call.1} parent=11 // pred_check
          %p377 = pneg %p259
        $region50: #{tpu_custom_call.1} parent=11 // pred_check_branch
          %379 = sbr.rel (%p377) target = $region52
        $region51: #{tpu_custom_call.1} parent=11 // pred_region
          _
        $region52: #{tpu_custom_call.1} parent=11 // pred_fallthru
          _
      $region12: #{tpu_custom_call.1} parent=5 // pred_fallthru
        _
      %p380 = scmp.lt.s32.totalorder %s23, 2
      // Predicated region
      $region53: #{tpu_custom_call.1} parent=5 // pred_check
        %p381 = pneg %p380
      $region54: #{tpu_custom_call.1} parent=5 // pred_check_branch
        %383 = sbr.rel (%p381) target = $region56
      $region55: #{tpu_custom_call.1} parent=5 // pred_region
        // Predicated region
        $region57: #{tpu_custom_call.1} parent=55 // pred_check
          %p384 = pneg %p43
        $region58: #{tpu_custom_call.1} parent=55 // pred_check_branch
          %386 = sbr.rel (%p384) target = $region60
        $region59: #{tpu_custom_call.1} parent=55 // pred_region
          %s387 = sand.u32 %s33, 1
          %s388 = scalar_lea.sflag [#allocation3], %s387
          %s389 = sand.u32 %s33, 1
          %s390 = smul.addr %s389, 208
          %s391 = scalar_lea.vmem [#allocation2], %s390
          %s392 = smul.u32 13, %s23
          %s393 = ssub.s32 25, %s392
          %p394 = scmp.lt.s32.totalorder %s393, 13
          %s395 = scalar_select %p394, %s393, 13
          %s396 = smul.u32 128, %s395
          %s397 = smul.u32 %s396, 2
          %s399 = ssub.s32 3328, %s397
          %400 = vsyncadd %s388, %s399
          %p401 = scmp.ne.s32.totalorder 0, %s397
          %s402 = smul.addr %s392, 2
          %s403 = smul.addr %s402, 128
          %s404 = scalar_lea.hbm %s0, %s403
          %s405 = smul.u32 16, %s395
          %s406 = sshll.u32 %s391, 4
          %s407 = int_to_ptr.vmem [resolvable:$true] %s406
          %s408 = sshll.u32 %s405, 4
          %412 = dma.hbm_to_vmem [thread:$0]  (%p401), %s404, %s408, %s407, %s388, 256, 256, 16
        $region60: #{tpu_custom_call.1} parent=55 // pred_fallthru
          _
      $region56: #{tpu_custom_call.1} parent=5 // pred_fallthru
        _
      %p413 = scmp.le.s32.totalorder 1, %s23
      %p414 = scmp.lt.s32.totalorder %s23, 3
      %p415 = pnand %p413, %p414
      %p416 = pneg %p415
      // Predicated region
      $region61: #{tpu_custom_call.1} parent=5 // pred_check
        _
      $region62: #{tpu_custom_call.1} parent=5 // pred_check_branch
        %418 = sbr.rel (%p415) target = $region64
      $region63: #{tpu_custom_call.1} parent=5 // pred_region
        %s419 = ssub.s32 %s23, 1
        %s420 = sand.u32 %s36, 1
        %s421 = scalar_lea.sflag [#allocation3], %s420
        %s422 = sand.u32 %s36, 1
        %s423 = smul.addr %s422, 208
        %s424 = scalar_lea.vmem [#allocation2], %s423
        // Predicated region
        $region65: #{tpu_custom_call.1} parent=63 // pred_check
          %p425 = pneg %p49
        $region66: #{tpu_custom_call.1} parent=63 // pred_check_branch
          %427 = sbr.rel (%p425) target = $region68
        $region67: #{tpu_custom_call.1} parent=63 // pred_region
          %428 = dma.done %s421, 3328
        $region68: #{tpu_custom_call.1} parent=63 // pred_fallthru
          _
        // Predicated region
        $region69: #{tpu_custom_call.1} parent=63 // pred_check
          %p429 = pneg %p70
        $region70: #{tpu_custom_call.1} parent=63 // pred_check_branch
          %431 = sbr.rel (%p429) target = $region72
        $region71: #{tpu_custom_call.1} parent=63 // pred_region
          %432 = dma.done [#allocation5], 4096
        $region72: #{tpu_custom_call.1} parent=63 // pred_fallthru
          _
        // Predicated region
        $region73: #{tpu_custom_call.1} parent=63 // pred_check
          %p433 = pneg %p112
        $region74: #{tpu_custom_call.1} parent=63 // pred_check_branch
          %435 = sbr.rel (%p433) target = $region76
        $region75: #{tpu_custom_call.1} parent=63 // pred_region
          %436 = dma.done [#allocation5], 2048
        $region76: #{tpu_custom_call.1} parent=63 // pred_fallthru
          _
        // Predicated region
        $region77: #{tpu_custom_call.1} parent=63 // pred_check
          %p437 = pneg %p154
        $region78: #{tpu_custom_call.1} parent=63 // pred_check_branch
          %439 = sbr.rel (%p437) target = $region80
        $region79: #{tpu_custom_call.1} parent=63 // pred_region
          %440 = dma.done [#allocation8], 2048
        $region80: #{tpu_custom_call.1} parent=63 // pred_fallthru
          _
        // Predicated region
        $region81: #{tpu_custom_call.1} parent=63 // pred_check
          %p441 = pneg %p196
        $region82: #{tpu_custom_call.1} parent=63 // pred_check_branch
          %443 = sbr.rel (%p441) target = $region84
        $region83: #{tpu_custom_call.1} parent=63 // pred_region
          %444 = dma.done [#allocation8], 2048
        $region84: #{tpu_custom_call.1} parent=63 // pred_fallthru
          _
        // Predicated region
        $region85: #{tpu_custom_call.1} parent=63 // pred_check
          %p445 = pneg %p238
        $region86: #{tpu_custom_call.1} parent=63 // pred_check_branch
          %447 = sbr.rel (%p445) target = $region88
        $region87: #{tpu_custom_call.1} parent=63 // pred_region
          %448 = dma.done [#allocation11], 2048
        $region88: #{tpu_custom_call.1} parent=63 // pred_fallthru
          _
        %s449 = sand.u32 %s36, 1
        %s450 = scalar_lea.sflag [#allocation3], %s449
        %s451 = sand.u32 %s36, 1
        %s452 = smul.addr %s451, 208
        %s453 = scalar_lea.vmem [#allocation2], %s452
        %p454 = pneg %p49
        %p455 = pneg %p46
        %p456 = pneg %p70
        %p457 = pneg %p67
        %p458 = pneg %p91
        %p459 = pneg %p88
        %p460 = pneg %p112
        %p461 = pneg %p109
        %p462 = pneg %p133
        %p463 = pneg %p130
        %p464 = pneg %p154
        %p465 = pneg %p151
        %p466 = pneg %p175
        %p467 = pneg %p172
        %p468 = pneg %p196
        %p469 = pneg %p193
        %p470 = pneg %p217
        %p471 = pneg %p214
        %p472 = pneg %p238
        %p473 = pneg %p235
        %p474 = pneg %p259
        %p475 = pneg %p256
        %p476 = pneg %p285
        %p477 = pneg %p282
        %s478 = sand.u32 %s272, 1
        %s479 = sand.u32 %s272, 1
        %s480 = smul.addr %s479, 104
        %s481 = scalar_lea.vmem [#allocation12], %s480
        %s482 = smul.u32 13, %s28
        %s483 = ssub.s32 25, %s482
        %p484 = scmp.lt.s32.totalorder %s483, 13
        %s485 = scalar_select %p484, %s483, 13
        %s486 = smul.u32 128, %s485
        %s487 = smul.u32 %s486, 2
        %s488 = smul.u32 13, %s28
        %s489 = ssub.s32 25, %s488
        %p490 = scmp.lt.s32.totalorder %s489, 13
        %s491 = scalar_select %p490, %s489, 13
        %s492 = smul.u32 128, %s491
        %v493 = vld [vmem:[%s424] sm:$0xff]
        %v494 = vld [vmem:[%s424 + $0x8] sm:$0xff]
        %v495 = vld [vmem:[%s424 + $0x10] sm:$0xff]
        %v496 = vld [vmem:[%s424 + $0x18] sm:$0xff]
        %v497 = vld [vmem:[%s424 + $0x20] sm:$0xff]
        %v498 = vld [vmem:[%s424 + $0x28] sm:$0xff]
        %v499 = vld [vmem:[%s424 + $0x30] sm:$0xff]
        %v500 = vld [vmem:[%s424 + $0x38] sm:$0xff]
        %v501 = vld [vmem:[%s424 + $0x40] sm:$0xff]
        %v502 = vld [vmem:[%s424 + $0x48] sm:$0xff]
        %v503 = vld [vmem:[%s424 + $0x50] sm:$0xff]
        %v504 = vld [vmem:[%s424 + $0x58] sm:$0xff]
        %v505 = vld [vmem:[%s424 + $0x60] sm:$0xff]
        %v506 = vld [vmem:[%s424 + $0x68] sm:$0xff]
        %v507 = vld [vmem:[%s424 + $0x70] sm:$0xff]
        %v508 = vld [vmem:[%s424 + $0x78] sm:$0xff]
        %v509 = vld [vmem:[%s424 + $0x80] sm:$0xff]
        %v510 = vld [vmem:[%s424 + $0x88] sm:$0xff]
        %v511 = vld [vmem:[%s424 + $0x90] sm:$0xff]
        %v512 = vld [vmem:[%s424 + $0x98] sm:$0xff]
        %v513 = vld [vmem:[%s424 + $0xa0] sm:$0xff]
        %v514 = vld [vmem:[%s424 + $0xa8] sm:$0xff]
        %v515 = vld [vmem:[%s424 + $0xb0] sm:$0xff]
        %v516 = vld [vmem:[%s424 + $0xb8] sm:$0xff]
        %v517 = vld [vmem:[%s424 + $0xc0] sm:$0xff]
        %v518 = vld [vmem:[%s424 + $0xc8] sm:$0xff]
        %v519 = vld [vmem:[#allocation4] sm:$0xff]
        %v520 = vld [vmem:[#allocation4 + $0x8] sm:$0xff]
        %v521 = vld [vmem:[#allocation4 + $0x10] sm:$0xff]
        %v522 = vld [vmem:[#allocation4 + $0x18] sm:$0xff]
        %v523 = vld [vmem:[#allocation4 + $0x20] sm:$0xff]
        %v524 = vld [vmem:[#allocation4 + $0x28] sm:$0xff]
        %v525 = vld [vmem:[#allocation4 + $0x30] sm:$0xff]
        %v526 = vld [vmem:[#allocation4 + $0x38] sm:$0xff]
        %v527 = vld [vmem:[#allocation4 + $0x40] sm:$0xff]
        %v528 = vld [vmem:[#allocation4 + $0x48] sm:$0xff]
        %v529 = vld [vmem:[#allocation4 + $0x50] sm:$0xff]
        %v530 = vld [vmem:[#allocation4 + $0x58] sm:$0xff]
        %v531 = vld [vmem:[#allocation4 + $0x60] sm:$0xff]
        %v532 = vld [vmem:[#allocation4 + $0x68] sm:$0xff]
        %v533 = vld [vmem:[#allocation4 + $0x70] sm:$0xff]
        %v534 = vld [vmem:[#allocation4 + $0x78] sm:$0xff]
        %v535 = vld [vmem:[#allocation4 + $0x80] sm:$0xff]
        %v536 = vld [vmem:[#allocation4 + $0x88] sm:$0xff]
        %v537 = vld [vmem:[#allocation4 + $0x90] sm:$0xff]
        %v538 = vld [vmem:[#allocation4 + $0x98] sm:$0xff]
        %v539 = vld [vmem:[#allocation4 + $0xa0] sm:$0xff]
        %v540 = vld [vmem:[#allocation4 + $0xa8] sm:$0xff]
        %v541 = vld [vmem:[#allocation4 + $0xb0] sm:$0xff]
        %v542 = vld [vmem:[#allocation4 + $0xb8] sm:$0xff]
        %v543 = vld [vmem:[#allocation4 + $0xc0] sm:$0xff]
        %v544 = vld [vmem:[#allocation4 + $0xc8] sm:$0xff]
        %v545 = vld [vmem:[#allocation4 + $0xd0] sm:$0xff]
        %v546 = vld [vmem:[#allocation4 + $0xd8] sm:$0xff]
        %v547 = vld [vmem:[#allocation4 + $0xe0] sm:$0xff]
        %v548 = vld [vmem:[#allocation4 + $0xe8] sm:$0xff]
        %v549 = vld [vmem:[#allocation4 + $0xf0] sm:$0xff]
        %v550 = vld [vmem:[#allocation4 + $0xf8] sm:$0xff]
        %v551 = vld [vmem:[%s2] sm:$0x1]
        %v553 = vlaneseq
        %v554 = vshrl.u32 %v553, 7
        %v555 = vsub.s32 0, %v554
        %v556 = vrot.slane %v551, %v555
        %558 = vmatprep.subr.mxu0 0.0
        %559 = vmatpush1.msra.mxu0 %v534
        %560 = vmatprep.subr.mxu0 0.0
        %561 = vmatpush1.msra.mxu0 %v533
        %562 = vmatprep.subr.mxu0 0.0
        %563 = vmatpush1.msra.mxu0 %v532
        %564 = vmatprep.subr.mxu0 0.0
        %565 = vmatpush1.msra.mxu0 %v531
        %566 = vmatprep.subr.mxu0 0.0
        %567 = vmatpush1.msra.mxu0 %v530
        %568 = vmatprep.subr.mxu0 0.0
        %569 = vmatpush1.msra.mxu0 %v529
        %570 = vmatprep.subr.mxu0 0.0
        %571 = vmatpush1.msra.mxu0 %v528
        %572 = vmatprep.subr.mxu0 0.0
        %573 = vmatpush1.msra.mxu0 %v527
        %574 = vmatprep.subr.mxu0 0.0
        %575 = vmatpush1.msra.mxu0 %v526
        %576 = vmatprep.subr.mxu0 0.0
        %577 = vmatpush1.msra.mxu0 %v525
        %578 = vmatprep.subr.mxu0 0.0
        %579 = vmatpush1.msra.mxu0 %v524
        %580 = vmatprep.subr.mxu0 0.0
        %581 = vmatpush1.msra.mxu0 %v523
        %582 = vmatprep.subr.mxu0 0.0
        %583 = vmatpush1.msra.mxu0 %v522
        %584 = vmatprep.subr.mxu0 0.0
        %585 = vmatpush1.msra.mxu0 %v521
        %586 = vmatprep.subr.mxu0 0.0
        %587 = vmatpush1.msra.mxu0 %v520
        %588 = vmatprep.subr.mxu0 0.0
        %589 = vmatpush1.msra.mxu0 %v519
        %590 = vmatprep.subr.mxu0 0.0
        %591 = vmatpush2.msra.mxu0 %v550
        %592 = vmatprep.subr.mxu0 0.0
        %593 = vmatpush2.msra.mxu0 %v549
        %594 = vmatprep.subr.mxu0 0.0
        %595 = vmatpush2.msra.mxu0 %v548
        %596 = vmatprep.subr.mxu0 0.0
        %597 = vmatpush2.msra.mxu0 %v547
        %598 = vmatprep.subr.mxu0 0.0
        %599 = vmatpush2.msra.mxu0 %v546
        %600 = vmatprep.subr.mxu0 0.0
        %601 = vmatpush2.msra.mxu0 %v545
        %602 = vmatprep.subr.mxu0 0.0
        %603 = vmatpush2.msra.mxu0 %v544
        %604 = vmatprep.subr.mxu0 0.0
        %605 = vmatpush2.msra.mxu0 %v543
        %606 = vmatprep.subr.mxu0 0.0
        %607 = vmatpush2.msra.mxu0 %v542
        %608 = vmatprep.subr.mxu0 0.0
        %609 = vmatpush2.msra.mxu0 %v541
        %610 = vmatprep.subr.mxu0 0.0
        %611 = vmatpush2.msra.mxu0 %v540
        %612 = vmatprep.subr.mxu0 0.0
        %613 = vmatpush2.msra.mxu0 %v539
        %614 = vmatprep.subr.mxu0 0.0
        %615 = vmatpush2.msra.mxu0 %v538
        %616 = vmatprep.subr.mxu0 0.0
        %617 = vmatpush2.msra.mxu0 %v537
        %618 = vmatprep.subr.mxu0 0.0
        %619 = vmatpush2.msra.mxu0 %v536
        %620 = vmatprep.subr.mxu0 0.0
        %621 = vmatpush2.msra.mxu0 %v535
        %622 = vmatprep.mubr.f32.mxu0 %v494
        %623 = vmatmul.mubr.f32.gmra.mxu0 %v493
        %v624 = vpop.f32.mrf.mxu0
        %v625 = vadd.f32 %v556, %v624
        %v626 = vpop.f32.mrf.mxu0
        %627 = vmatprep.mubr.f32.mxu0 %v496
        %628 = vmatmul.mubr.f32.gmra.mxu0 %v495
        %v629 = vpop.f32.mrf.mxu0
        %v630 = vadd.f32 %v556, %v629
        %v631 = vpop.f32.mrf.mxu0
        %632 = vmatprep.mubr.f32.mxu0 %v498
        %633 = vmatmul.mubr.f32.gmra.mxu0 %v497
        %v634 = vpop.f32.mrf.mxu0
        %v635 = vadd.f32 %v556, %v634
        %v636 = vpop.f32.mrf.mxu0
        %637 = vmatprep.mubr.f32.mxu0 %v500
        %638 = vmatmul.mubr.f32.gmra.mxu0 %v499
        %v639 = vpop.f32.mrf.mxu0
        %v640 = vadd.f32 %v556, %v639
        %v641 = vpop.f32.mrf.mxu0
        %642 = vmatprep.mubr.f32.mxu0 %v502
        %643 = vmatmul.mubr.f32.gmra.mxu0 %v501
        %v644 = vpop.f32.mrf.mxu0
        %v645 = vadd.f32 %v556, %v644
        %v646 = vpop.f32.mrf.mxu0
        %647 = vmatprep.mubr.f32.mxu0 %v504
        %648 = vmatmul.mubr.f32.gmra.mxu0 %v503
        %v649 = vpop.f32.mrf.mxu0
        %v650 = vadd.f32 %v556, %v649
        %v651 = vpop.f32.mrf.mxu0
        %652 = vmatprep.mubr.f32.mxu0 %v506
        %653 = vmatmul.mubr.f32.gmra.mxu0 %v505
        %v654 = vpop.f32.mrf.mxu0
        %v655 = vadd.f32 %v556, %v654
        %v656 = vpop.f32.mrf.mxu0
        %657 = vmatprep.mubr.f32.mxu0 %v508
        %658 = vmatmul.mubr.f32.gmra.mxu0 %v507
        %v659 = vpop.f32.mrf.mxu0
        %v660 = vadd.f32 %v556, %v659
        %v661 = vpop.f32.mrf.mxu0
        %662 = vmatprep.mubr.f32.mxu0 %v510
        %663 = vmatmul.mubr.f32.gmra.mxu0 %v509
        %v664 = vpop.f32.mrf.mxu0
        %v665 = vadd.f32 %v556, %v664
        %v666 = vpop.f32.mrf.mxu0
        %667 = vmatprep.mubr.f32.mxu0 %v512
        %668 = vmatmul.mubr.f32.gmra.mxu0 %v511
        %v669 = vpop.f32.mrf.mxu0
        %v670 = vadd.f32 %v556, %v669
        %v671 = vpop.f32.mrf.mxu0
        %672 = vmatprep.mubr.f32.mxu0 %v514
        %673 = vmatmul.mubr.f32.gmra.mxu0 %v513
        %v674 = vpop.f32.mrf.mxu0
        %v675 = vadd.f32 %v556, %v674
        %v676 = vpop.f32.mrf.mxu0
        %677 = vmatprep.mubr.f32.mxu0 %v516
        %678 = vmatmul.mubr.f32.gmra.mxu0 %v515
        %v679 = vpop.f32.mrf.mxu0
        %v680 = vadd.f32 %v556, %v679
        %v681 = vpop.f32.mrf.mxu0
        %682 = vmatprep.mubr.f32.mxu0 %v518
        %683 = vmatmul.mubr.f32.gmra.mxu0 %v517
        %v684 = vpop.f32.mrf.mxu0
        %v685 = vadd.f32 %v556, %v684
        %v686 = vpop.f32.mrf.mxu0
        %687 = vdwg.mxu0
        %v688 = vmax.f32 %v625, 0.0
        %v689 = vmax.f32 %v630, 0.0
        %v690 = vmax.f32 %v635, 0.0
        %v691 = vmax.f32 %v640, 0.0
        %v692 = vmax.f32 %v645, 0.0
        %v693 = vmax.f32 %v650, 0.0
        %v694 = vmax.f32 %v655, 0.0
        %v695 = vmax.f32 %v660, 0.0
        %v696 = vmax.f32 %v665, 0.0
        %v697 = vmax.f32 %v670, 0.0
        %v698 = vmax.f32 %v675, 0.0
        %v699 = vmax.f32 %v680, 0.0
        %v700 = vmax.f32 %v685, 0.0
        %v701 = vld [vmem:[#allocation6] sm:$0xff]
        %v702 = vld [vmem:[#allocation6 + $0x8] sm:$0xff]
        %v703 = vld [vmem:[#allocation6 + $0x10] sm:$0xff]
        %v704 = vld [vmem:[#allocation6 + $0x18] sm:$0xff]
        %v705 = vld [vmem:[#allocation6 + $0x20] sm:$0xff]
        %v706 = vld [vmem:[#allocation6 + $0x28] sm:$0xff]
        %v707 = vld [vmem:[#allocation6 + $0x30] sm:$0xff]
        %v708 = vld [vmem:[#allocation6 + $0x38] sm:$0xff]
        %v709 = vld [vmem:[#allocation6 + $0x40] sm:$0xff]
        %v710 = vld [vmem:[#allocation6 + $0x48] sm:$0xff]
        %v711 = vld [vmem:[#allocation6 + $0x50] sm:$0xff]
        %v712 = vld [vmem:[#allocation6 + $0x58] sm:$0xff]
        %v713 = vld [vmem:[#allocation6 + $0x60] sm:$0xff]
        %v714 = vld [vmem:[#allocation6 + $0x68] sm:$0xff]
        %v715 = vld [vmem:[#allocation6 + $0x70] sm:$0xff]
        %v716 = vld [vmem:[#allocation6 + $0x78] sm:$0xff]
        %v717 = vld [vmem:[%s4] sm:$0x1]
        %v719 = vlaneseq
        %v720 = vshrl.u32 %v719, 7
        %v721 = vsub.s32 0, %v720
        %v722 = vrot.slane %v717, %v721
        %724 = vmatprep.subr.mxu0 0.0
        %725 = vmatpush1.msra.mxu0 %v716
        %726 = vmatprep.subr.mxu0 0.0
        %727 = vmatpush1.msra.mxu0 %v715
        %728 = vmatprep.subr.mxu0 0.0
        %729 = vmatpush1.msra.mxu0 %v714
        %730 = vmatprep.subr.mxu0 0.0
        %731 = vmatpush1.msra.mxu0 %v713
        %732 = vmatprep.subr.mxu0 0.0
        %733 = vmatpush1.msra.mxu0 %v712
        %734 = vmatprep.subr.mxu0 0.0
        %735 = vmatpush1.msra.mxu0 %v711
        %736 = vmatprep.subr.mxu0 0.0
        %737 = vmatpush1.msra.mxu0 %v710
        %738 = vmatprep.subr.mxu0 0.0
        %739 = vmatpush1.msra.mxu0 %v709
        %740 = vmatprep.subr.mxu0 0.0
        %741 = vmatpush1.msra.mxu0 %v708
        %742 = vmatprep.subr.mxu0 0.0
        %743 = vmatpush1.msra.mxu0 %v707
        %744 = vmatprep.subr.mxu0 0.0
        %745 = vmatpush1.msra.mxu0 %v706
        %746 = vmatprep.subr.mxu0 0.0
        %747 = vmatpush1.msra.mxu0 %v705
        %748 = vmatprep.subr.mxu0 0.0
        %749 = vmatpush1.msra.mxu0 %v704
        %750 = vmatprep.subr.mxu0 0.0
        %751 = vmatpush1.msra.mxu0 %v703
        %752 = vmatprep.subr.mxu0 0.0
        %753 = vmatpush1.msra.mxu0 %v702
        %754 = vmatprep.subr.mxu0 0.0
        %755 = vmatpush1.msra.mxu0 %v701
        %756 = vmatprep.subr.mxu0 0.0
        %757 = vmatpush2.msra.mxu0 0.0
        %758 = vmatprep.subr.mxu0 0.0
        %759 = vmatpush2.msra.mxu0 0.0
        %760 = vmatprep.subr.mxu0 0.0
        %761 = vmatpush2.msra.mxu0 0.0
        %762 = vmatprep.subr.mxu0 0.0
        %763 = vmatpush2.msra.mxu0 0.0
        %764 = vmatprep.subr.mxu0 0.0
        %765 = vmatpush2.msra.mxu0 0.0
        %766 = vmatprep.subr.mxu0 0.0
        %767 = vmatpush2.msra.mxu0 0.0
        %768 = vmatprep.subr.mxu0 0.0
        %769 = vmatpush2.msra.mxu0 0.0
        %770 = vmatprep.subr.mxu0 0.0
        %771 = vmatpush2.msra.mxu0 0.0
        %772 = vmatprep.subr.mxu0 0.0
        %773 = vmatpush2.msra.mxu0 0.0
        %774 = vmatprep.subr.mxu0 0.0
        %775 = vmatpush2.msra.mxu0 0.0
        %776 = vmatprep.subr.mxu0 0.0
        %777 = vmatpush2.msra.mxu0 0.0
        %778 = vmatprep.subr.mxu0 0.0
        %779 = vmatpush2.msra.mxu0 0.0
        %780 = vmatprep.subr.mxu0 0.0
        %781 = vmatpush2.msra.mxu0 0.0
        %782 = vmatprep.subr.mxu0 0.0
        %783 = vmatpush2.msra.mxu0 0.0
        %784 = vmatprep.subr.mxu0 0.0
        %785 = vmatpush2.msra.mxu0 0.0
        %786 = vmatprep.subr.mxu0 0.0
        %787 = vmatpush2.msra.mxu0 0.0
        %788 = vmatprep.mubr.f32.mxu0 0.0
        %789 = vmatmul.mubr.f32.gmra.mxu0 %v688
        %v790 = vpop.f32.mrf.mxu0
        %v791 = vadd.f32 %v722, %v790
        %v792 = vpop.f32.mrf.mxu0
        %793 = vmatprep.mubr.f32.mxu0 0.0
        %794 = vmatmul.mubr.f32.gmra.mxu0 %v689
        %v795 = vpop.f32.mrf.mxu0
        %v796 = vadd.f32 %v722, %v795
        %v797 = vpop.f32.mrf.mxu0
        %798 = vmatprep.mubr.f32.mxu0 0.0
        %799 = vmatmul.mubr.f32.gmra.mxu0 %v690
        %v800 = vpop.f32.mrf.mxu0
        %v801 = vadd.f32 %v722, %v800
        %v802 = vpop.f32.mrf.mxu0
        %803 = vmatprep.mubr.f32.mxu0 0.0
        %804 = vmatmul.mubr.f32.gmra.mxu0 %v691
        %v805 = vpop.f32.mrf.mxu0
        %v806 = vadd.f32 %v722, %v805
        %v807 = vpop.f32.mrf.mxu0
        %808 = vmatprep.mubr.f32.mxu0 0.0
        %809 = vmatmul.mubr.f32.gmra.mxu0 %v692
        %v810 = vpop.f32.mrf.mxu0
        %v811 = vadd.f32 %v722, %v810
        %v812 = vpop.f32.mrf.mxu0
        %813 = vmatprep.mubr.f32.mxu0 0.0
        %814 = vmatmul.mubr.f32.gmra.mxu0 %v693
        %v815 = vpop.f32.mrf.mxu0
        %v816 = vadd.f32 %v722, %v815
        %v817 = vpop.f32.mrf.mxu0
        %818 = vmatprep.mubr.f32.mxu0 0.0
        %819 = vmatmul.mubr.f32.gmra.mxu0 %v694
        %v820 = vpop.f32.mrf.mxu0
        %v821 = vadd.f32 %v722, %v820
        %v822 = vpop.f32.mrf.mxu0
        %823 = vmatprep.mubr.f32.mxu0 0.0
        %824 = vmatmul.mubr.f32.gmra.mxu0 %v695
        %v825 = vpop.f32.mrf.mxu0
        %v826 = vadd.f32 %v722, %v825
        %v827 = vpop.f32.mrf.mxu0
        %828 = vmatprep.mubr.f32.mxu0 0.0
        %829 = vmatmul.mubr.f32.gmra.mxu0 %v696
        %v830 = vpop.f32.mrf.mxu0
        %v831 = vadd.f32 %v722, %v830
        %v832 = vpop.f32.mrf.mxu0
        %833 = vmatprep.mubr.f32.mxu0 0.0
        %834 = vmatmul.mubr.f32.gmra.mxu0 %v697
        %v835 = vpop.f32.mrf.mxu0
        %v836 = vadd.f32 %v722, %v835
        %v837 = vpop.f32.mrf.mxu0
        %838 = vmatprep.mubr.f32.mxu0 0.0
        %839 = vmatmul.mubr.f32.gmra.mxu0 %v698
        %v840 = vpop.f32.mrf.mxu0
        %v841 = vadd.f32 %v722, %v840
        %v842 = vpop.f32.mrf.mxu0
        %843 = vmatprep.mubr.f32.mxu0 0.0
        %844 = vmatmul.mubr.f32.gmra.mxu0 %v699
        %v845 = vpop.f32.mrf.mxu0
        %v846 = vadd.f32 %v722, %v845
        %v847 = vpop.f32.mrf.mxu0
        %848 = vmatprep.mubr.f32.mxu0 0.0
        %849 = vmatmul.mubr.f32.gmra.mxu0 %v700
        %v850 = vpop.f32.mrf.mxu0
        %v851 = vadd.f32 %v722, %v850
        %v852 = vpop.f32.mrf.mxu0
        %853 = vdwg.mxu0
        %v854 = vmax.f32 %v791, 0.0
        %v855 = vmax.f32 %v796, 0.0
        %v856 = vmax.f32 %v801, 0.0
        %v857 = vmax.f32 %v806, 0.0
        %v858 = vmax.f32 %v811, 0.0
        %v859 = vmax.f32 %v816, 0.0
        %v860 = vmax.f32 %v821, 0.0
        %v861 = vmax.f32 %v826, 0.0
        %v862 = vmax.f32 %v831, 0.0
        %v863 = vmax.f32 %v836, 0.0
        %v864 = vmax.f32 %v841, 0.0
        %v865 = vmax.f32 %v846, 0.0
        %v866 = vmax.f32 %v851, 0.0
        %v867 = vld [vmem:[#allocation7] sm:$0xff]
        %v868 = vld [vmem:[#allocation7 + $0x8] sm:$0xff]
        %v869 = vld [vmem:[#allocation7 + $0x10] sm:$0xff]
        %v870 = vld [vmem:[#allocation7 + $0x18] sm:$0xff]
        %v871 = vld [vmem:[#allocation7 + $0x20] sm:$0xff]
        %v872 = vld [vmem:[#allocation7 + $0x28] sm:$0xff]
        %v873 = vld [vmem:[#allocation7 + $0x30] sm:$0xff]
        %v874 = vld [vmem:[#allocation7 + $0x38] sm:$0xff]
        %v875 = vld [vmem:[#allocation7 + $0x40] sm:$0xff]
        %v876 = vld [vmem:[#allocation7 + $0x48] sm:$0xff]
        %v877 = vld [vmem:[#allocation7 + $0x50] sm:$0xff]
        %v878 = vld [vmem:[#allocation7 + $0x58] sm:$0xff]
        %v879 = vld [vmem:[#allocation7 + $0x60] sm:$0xff]
        %v880 = vld [vmem:[#allocation7 + $0x68] sm:$0xff]
        %v881 = vld [vmem:[#allocation7 + $0x70] sm:$0xff]
        %v882 = vld [vmem:[#allocation7 + $0x78] sm:$0xff]
        %v883 = vld [vmem:[%s6] sm:$0x1]
        %v885 = vlaneseq
        %v886 = vshrl.u32 %v885, 7
        %v887 = vsub.s32 0, %v886
        %v888 = vrot.slane %v883, %v887
        %890 = vmatprep.subr.mxu0 0.0
        %891 = vmatpush1.msra.mxu0 %v882
        %892 = vmatprep.subr.mxu0 0.0
        %893 = vmatpush1.msra.mxu0 %v881
        %894 = vmatprep.subr.mxu0 0.0
        %895 = vmatpush1.msra.mxu0 %v880
        %896 = vmatprep.subr.mxu0 0.0
        %897 = vmatpush1.msra.mxu0 %v879
        %898 = vmatprep.subr.mxu0 0.0
        %899 = vmatpush1.msra.mxu0 %v878
        %900 = vmatprep.subr.mxu0 0.0
        %901 = vmatpush1.msra.mxu0 %v877
        %902 = vmatprep.subr.mxu0 0.0
        %903 = vmatpush1.msra.mxu0 %v876
        %904 = vmatprep.subr.mxu0 0.0
        %905 = vmatpush1.msra.mxu0 %v875
        %906 = vmatprep.subr.mxu0 0.0
        %907 = vmatpush1.msra.mxu0 %v874
        %908 = vmatprep.subr.mxu0 0.0
        %909 = vmatpush1.msra.mxu0 %v873
        %910 = vmatprep.subr.mxu0 0.0
        %911 = vmatpush1.msra.mxu0 %v872
        %912 = vmatprep.subr.mxu0 0.0
        %913 = vmatpush1.msra.mxu0 %v871
        %914 = vmatprep.subr.mxu0 0.0
        %915 = vmatpush1.msra.mxu0 %v870
        %916 = vmatprep.subr.mxu0 0.0
        %917 = vmatpush1.msra.mxu0 %v869
        %918 = vmatprep.subr.mxu0 0.0
        %919 = vmatpush1.msra.mxu0 %v868
        %920 = vmatprep.subr.mxu0 0.0
        %921 = vmatpush1.msra.mxu0 %v867
        %922 = vmatprep.subr.mxu0 0.0
        %923 = vmatpush2.msra.mxu0 0.0
        %924 = vmatprep.subr.mxu0 0.0
        %925 = vmatpush2.msra.mxu0 0.0
        %926 = vmatprep.subr.mxu0 0.0
        %927 = vmatpush2.msra.mxu0 0.0
        %928 = vmatprep.subr.mxu0 0.0
        %929 = vmatpush2.msra.mxu0 0.0
        %930 = vmatprep.subr.mxu0 0.0
        %931 = vmatpush2.msra.mxu0 0.0
        %932 = vmatprep.subr.mxu0 0.0
        %933 = vmatpush2.msra.mxu0 0.0
        %934 = vmatprep.subr.mxu0 0.0
        %935 = vmatpush2.msra.mxu0 0.0
        %936 = vmatprep.subr.mxu0 0.0
        %937 = vmatpush2.msra.mxu0 0.0
        %938 = vmatprep.subr.mxu0 0.0
        %939 = vmatpush2.msra.mxu0 0.0
        %940 = vmatprep.subr.mxu0 0.0
        %941 = vmatpush2.msra.mxu0 0.0
        %942 = vmatprep.subr.mxu0 0.0
        %943 = vmatpush2.msra.mxu0 0.0
        %944 = vmatprep.subr.mxu0 0.0
        %945 = vmatpush2.msra.mxu0 0.0
        %946 = vmatprep.subr.mxu0 0.0
        %947 = vmatpush2.msra.mxu0 0.0
        %948 = vmatprep.subr.mxu0 0.0
        %949 = vmatpush2.msra.mxu0 0.0
        %950 = vmatprep.subr.mxu0 0.0
        %951 = vmatpush2.msra.mxu0 0.0
        %952 = vmatprep.subr.mxu0 0.0
        %953 = vmatpush2.msra.mxu0 0.0
        %954 = vmatprep.mubr.f32.mxu0 0.0
        %955 = vmatmul.mubr.f32.gmra.mxu0 %v854
        %v956 = vpop.f32.mrf.mxu0
        %v957 = vadd.f32 %v888, %v956
        %v958 = vpop.f32.mrf.mxu0
        %959 = vmatprep.mubr.f32.mxu0 0.0
        %960 = vmatmul.mubr.f32.gmra.mxu0 %v855
        %v961 = vpop.f32.mrf.mxu0
        %v962 = vadd.f32 %v888, %v961
        %v963 = vpop.f32.mrf.mxu0
        %964 = vmatprep.mubr.f32.mxu0 0.0
        %965 = vmatmul.mubr.f32.gmra.mxu0 %v856
        %v966 = vpop.f32.mrf.mxu0
        %v967 = vadd.f32 %v888, %v966
        %v968 = vpop.f32.mrf.mxu0
        %969 = vmatprep.mubr.f32.mxu0 0.0
        %970 = vmatmul.mubr.f32.gmra.mxu0 %v857
        %v971 = vpop.f32.mrf.mxu0
        %v972 = vadd.f32 %v888, %v971
        %v973 = vpop.f32.mrf.mxu0
        %974 = vmatprep.mubr.f32.mxu0 0.0
        %975 = vmatmul.mubr.f32.gmra.mxu0 %v858
        %v976 = vpop.f32.mrf.mxu0
        %v977 = vadd.f32 %v888, %v976
        %v978 = vpop.f32.mrf.mxu0
        %979 = vmatprep.mubr.f32.mxu0 0.0
        %980 = vmatmul.mubr.f32.gmra.mxu0 %v859
        %v981 = vpop.f32.mrf.mxu0
        %v982 = vadd.f32 %v888, %v981
        %v983 = vpop.f32.mrf.mxu0
        %984 = vmatprep.mubr.f32.mxu0 0.0
        %985 = vmatmul.mubr.f32.gmra.mxu0 %v860
        %v986 = vpop.f32.mrf.mxu0
        %v987 = vadd.f32 %v888, %v986
        %v988 = vpop.f32.mrf.mxu0
        %989 = vmatprep.mubr.f32.mxu0 0.0
        %990 = vmatmul.mubr.f32.gmra.mxu0 %v861
        %v991 = vpop.f32.mrf.mxu0
        %v992 = vadd.f32 %v888, %v991
        %v993 = vpop.f32.mrf.mxu0
        %994 = vmatprep.mubr.f32.mxu0 0.0
        %995 = vmatmul.mubr.f32.gmra.mxu0 %v862
        %v996 = vpop.f32.mrf.mxu0
        %v997 = vadd.f32 %v888, %v996
        %v998 = vpop.f32.mrf.mxu0
        %999 = vmatprep.mubr.f32.mxu0 0.0
        %1000 = vmatmul.mubr.f32.gmra.mxu0 %v863
        %v1001 = vpop.f32.mrf.mxu0
        %v1002 = vadd.f32 %v888, %v1001
        %v1003 = vpop.f32.mrf.mxu0
        %1004 = vmatprep.mubr.f32.mxu0 0.0
        %1005 = vmatmul.mubr.f32.gmra.mxu0 %v864
        %v1006 = vpop.f32.mrf.mxu0
        %v1007 = vadd.f32 %v888, %v1006
        %v1008 = vpop.f32.mrf.mxu0
        %1009 = vmatprep.mubr.f32.mxu0 0.0
        %1010 = vmatmul.mubr.f32.gmra.mxu0 %v865
        %v1011 = vpop.f32.mrf.mxu0
        %v1012 = vadd.f32 %v888, %v1011
        %v1013 = vpop.f32.mrf.mxu0
        %1014 = vmatprep.mubr.f32.mxu0 0.0
        %1015 = vmatmul.mubr.f32.gmra.mxu0 %v866
        %v1016 = vpop.f32.mrf.mxu0
        %v1017 = vadd.f32 %v888, %v1016
        %v1018 = vpop.f32.mrf.mxu0
        %1019 = vdwg.mxu0
        %v1020 = vmax.f32 %v957, 0.0
        %v1021 = vmax.f32 %v962, 0.0
        %v1022 = vmax.f32 %v967, 0.0
        %v1023 = vmax.f32 %v972, 0.0
        %v1024 = vmax.f32 %v977, 0.0
        %v1025 = vmax.f32 %v982, 0.0
        %v1026 = vmax.f32 %v987, 0.0
        %v1027 = vmax.f32 %v992, 0.0
        %v1028 = vmax.f32 %v997, 0.0
        %v1029 = vmax.f32 %v1002, 0.0
        %v1030 = vmax.f32 %v1007, 0.0
        %v1031 = vmax.f32 %v1012, 0.0
        %v1032 = vmax.f32 %v1017, 0.0
        %v1033 = vld [vmem:[#allocation9] sm:$0xff]
        %v1034 = vld [vmem:[#allocation9 + $0x8] sm:$0xff]
        %v1035 = vld [vmem:[#allocation9 + $0x10] sm:$0xff]
        %v1036 = vld [vmem:[#allocation9 + $0x18] sm:$0xff]
        %v1037 = vld [vmem:[#allocation9 + $0x20] sm:$0xff]
        %v1038 = vld [vmem:[#allocation9 + $0x28] sm:$0xff]
        %v1039 = vld [vmem:[#allocation9 + $0x30] sm:$0xff]
        %v1040 = vld [vmem:[#allocation9 + $0x38] sm:$0xff]
        %v1041 = vld [vmem:[#allocation9 + $0x40] sm:$0xff]
        %v1042 = vld [vmem:[#allocation9 + $0x48] sm:$0xff]
        %v1043 = vld [vmem:[#allocation9 + $0x50] sm:$0xff]
        %v1044 = vld [vmem:[#allocation9 + $0x58] sm:$0xff]
        %v1045 = vld [vmem:[#allocation9 + $0x60] sm:$0xff]
        %v1046 = vld [vmem:[#allocation9 + $0x68] sm:$0xff]
        %v1047 = vld [vmem:[#allocation9 + $0x70] sm:$0xff]
        %v1048 = vld [vmem:[#allocation9 + $0x78] sm:$0xff]
        %v1049 = vld [vmem:[%s8] sm:$0x1]
        %v1051 = vlaneseq
        %v1052 = vshrl.u32 %v1051, 7
        %v1053 = vsub.s32 0, %v1052
        %v1054 = vrot.slane %v1049, %v1053
        %1056 = vmatprep.subr.mxu0 0.0
        %1057 = vmatpush1.msra.mxu0 %v1048
        %1058 = vmatprep.subr.mxu0 0.0
        %1059 = vmatpush1.msra.mxu0 %v1047
        %1060 = vmatprep.subr.mxu0 0.0
        %1061 = vmatpush1.msra.mxu0 %v1046
        %1062 = vmatprep.subr.mxu0 0.0
        %1063 = vmatpush1.msra.mxu0 %v1045
        %1064 = vmatprep.subr.mxu0 0.0
        %1065 = vmatpush1.msra.mxu0 %v1044
        %1066 = vmatprep.subr.mxu0 0.0
        %1067 = vmatpush1.msra.mxu0 %v1043
        %1068 = vmatprep.subr.mxu0 0.0
        %1069 = vmatpush1.msra.mxu0 %v1042
        %1070 = vmatprep.subr.mxu0 0.0
        %1071 = vmatpush1.msra.mxu0 %v1041
        %1072 = vmatprep.subr.mxu0 0.0
        %1073 = vmatpush1.msra.mxu0 %v1040
        %1074 = vmatprep.subr.mxu0 0.0
        %1075 = vmatpush1.msra.mxu0 %v1039
        %1076 = vmatprep.subr.mxu0 0.0
        %1077 = vmatpush1.msra.mxu0 %v1038
        %1078 = vmatprep.subr.mxu0 0.0
        %1079 = vmatpush1.msra.mxu0 %v1037
        %1080 = vmatprep.subr.mxu0 0.0
        %1081 = vmatpush1.msra.mxu0 %v1036
        %1082 = vmatprep.subr.mxu0 0.0
        %1083 = vmatpush1.msra.mxu0 %v1035
        %1084 = vmatprep.subr.mxu0 0.0
        %1085 = vmatpush1.msra.mxu0 %v1034
        %1086 = vmatprep.subr.mxu0 0.0
        %1087 = vmatpush1.msra.mxu0 %v1033
        %1088 = vmatprep.subr.mxu0 0.0
        %1089 = vmatpush2.msra.mxu0 0.0
        %1090 = vmatprep.subr.mxu0 0.0
        %1091 = vmatpush2.msra.mxu0 0.0
        %1092 = vmatprep.subr.mxu0 0.0
        %1093 = vmatpush2.msra.mxu0 0.0
        %1094 = vmatprep.subr.mxu0 0.0
        %1095 = vmatpush2.msra.mxu0 0.0
        %1096 = vmatprep.subr.mxu0 0.0
        %1097 = vmatpush2.msra.mxu0 0.0
        %1098 = vmatprep.subr.mxu0 0.0
        %1099 = vmatpush2.msra.mxu0 0.0
        %1100 = vmatprep.subr.mxu0 0.0
        %1101 = vmatpush2.msra.mxu0 0.0
        %1102 = vmatprep.subr.mxu0 0.0
        %1103 = vmatpush2.msra.mxu0 0.0
        %1104 = vmatprep.subr.mxu0 0.0
        %1105 = vmatpush2.msra.mxu0 0.0
        %1106 = vmatprep.subr.mxu0 0.0
        %1107 = vmatpush2.msra.mxu0 0.0
        %1108 = vmatprep.subr.mxu0 0.0
        %1109 = vmatpush2.msra.mxu0 0.0
        %1110 = vmatprep.subr.mxu0 0.0
        %1111 = vmatpush2.msra.mxu0 0.0
        %1112 = vmatprep.subr.mxu0 0.0
        %1113 = vmatpush2.msra.mxu0 0.0
        %1114 = vmatprep.subr.mxu0 0.0
        %1115 = vmatpush2.msra.mxu0 0.0
        %1116 = vmatprep.subr.mxu0 0.0
        %1117 = vmatpush2.msra.mxu0 0.0
        %1118 = vmatprep.subr.mxu0 0.0
        %1119 = vmatpush2.msra.mxu0 0.0
        %1120 = vmatprep.mubr.f32.mxu0 0.0
        %1121 = vmatmul.mubr.f32.gmra.mxu0 %v1020
        %v1122 = vpop.f32.mrf.mxu0
        %v1123 = vadd.f32 %v1054, %v1122
        %v1124 = vpop.f32.mrf.mxu0
        %1125 = vmatprep.mubr.f32.mxu0 0.0
        %1126 = vmatmul.mubr.f32.gmra.mxu0 %v1021
        %v1127 = vpop.f32.mrf.mxu0
        %v1128 = vadd.f32 %v1054, %v1127
        %v1129 = vpop.f32.mrf.mxu0
        %1130 = vmatprep.mubr.f32.mxu0 0.0
        %1131 = vmatmul.mubr.f32.gmra.mxu0 %v1022
        %v1132 = vpop.f32.mrf.mxu0
        %v1133 = vadd.f32 %v1054, %v1132
        %v1134 = vpop.f32.mrf.mxu0
        %1135 = vmatprep.mubr.f32.mxu0 0.0
        %1136 = vmatmul.mubr.f32.gmra.mxu0 %v1023
        %v1137 = vpop.f32.mrf.mxu0
        %v1138 = vadd.f32 %v1054, %v1137
        %v1139 = vpop.f32.mrf.mxu0
        %1140 = vmatprep.mubr.f32.mxu0 0.0
        %1141 = vmatmul.mubr.f32.gmra.mxu0 %v1024
        %v1142 = vpop.f32.mrf.mxu0
        %v1143 = vadd.f32 %v1054, %v1142
        %v1144 = vpop.f32.mrf.mxu0
        %1145 = vmatprep.mubr.f32.mxu0 0.0
        %1146 = vmatmul.mubr.f32.gmra.mxu0 %v1025
        %v1147 = vpop.f32.mrf.mxu0
        %v1148 = vadd.f32 %v1054, %v1147
        %v1149 = vpop.f32.mrf.mxu0
        %1150 = vmatprep.mubr.f32.mxu0 0.0
        %1151 = vmatmul.mubr.f32.gmra.mxu0 %v1026
        %v1152 = vpop.f32.mrf.mxu0
        %v1153 = vadd.f32 %v1054, %v1152
        %v1154 = vpop.f32.mrf.mxu0
        %1155 = vmatprep.mubr.f32.mxu0 0.0
        %1156 = vmatmul.mubr.f32.gmra.mxu0 %v1027
        %v1157 = vpop.f32.mrf.mxu0
        %v1158 = vadd.f32 %v1054, %v1157
        %v1159 = vpop.f32.mrf.mxu0
        %1160 = vmatprep.mubr.f32.mxu0 0.0
        %1161 = vmatmul.mubr.f32.gmra.mxu0 %v1028
        %v1162 = vpop.f32.mrf.mxu0
        %v1163 = vadd.f32 %v1054, %v1162
        %v1164 = vpop.f32.mrf.mxu0
        %1165 = vmatprep.mubr.f32.mxu0 0.0
        %1166 = vmatmul.mubr.f32.gmra.mxu0 %v1029
        %v1167 = vpop.f32.mrf.mxu0
        %v1168 = vadd.f32 %v1054, %v1167
        %v1169 = vpop.f32.mrf.mxu0
        %1170 = vmatprep.mubr.f32.mxu0 0.0
        %1171 = vmatmul.mubr.f32.gmra.mxu0 %v1030
        %v1172 = vpop.f32.mrf.mxu0
        %v1173 = vadd.f32 %v1054, %v1172
        %v1174 = vpop.f32.mrf.mxu0
        %1175 = vmatprep.mubr.f32.mxu0 0.0
        %1176 = vmatmul.mubr.f32.gmra.mxu0 %v1031
        %v1177 = vpop.f32.mrf.mxu0
        %v1178 = vadd.f32 %v1054, %v1177
        %v1179 = vpop.f32.mrf.mxu0
        %1180 = vmatprep.mubr.f32.mxu0 0.0
        %1181 = vmatmul.mubr.f32.gmra.mxu0 %v1032
        %v1182 = vpop.f32.mrf.mxu0
        %v1183 = vadd.f32 %v1054, %v1182
        %v1184 = vpop.f32.mrf.mxu0
        %1185 = vdwg.mxu0
        %v1186 = vmax.f32 %v1123, 0.0
        %v1187 = vmax.f32 %v1128, 0.0
        %v1188 = vmax.f32 %v1133, 0.0
        %v1189 = vmax.f32 %v1138, 0.0
        %v1190 = vmax.f32 %v1143, 0.0
        %v1191 = vmax.f32 %v1148, 0.0
        %v1192 = vmax.f32 %v1153, 0.0
        %v1193 = vmax.f32 %v1158, 0.0
        %v1194 = vmax.f32 %v1163, 0.0
        %v1195 = vmax.f32 %v1168, 0.0
        %v1196 = vmax.f32 %v1173, 0.0
        %v1197 = vmax.f32 %v1178, 0.0
        %v1198 = vmax.f32 %v1183, 0.0
        %v1199 = vld [vmem:[#allocation10] sm:$0xff]
        %v1200 = vld [vmem:[#allocation10 + $0x8] sm:$0xff]
        %v1201 = vld [vmem:[#allocation10 + $0x10] sm:$0xff]
        %v1202 = vld [vmem:[#allocation10 + $0x18] sm:$0xff]
        %v1203 = vld [vmem:[#allocation10 + $0x20] sm:$0xff]
        %v1204 = vld [vmem:[#allocation10 + $0x28] sm:$0xff]
        %v1205 = vld [vmem:[#allocation10 + $0x30] sm:$0xff]
        %v1206 = vld [vmem:[#allocation10 + $0x38] sm:$0xff]
        %v1207 = vld [vmem:[#allocation10 + $0x40] sm:$0xff]
        %v1208 = vld [vmem:[#allocation10 + $0x48] sm:$0xff]
        %v1209 = vld [vmem:[#allocation10 + $0x50] sm:$0xff]
        %v1210 = vld [vmem:[#allocation10 + $0x58] sm:$0xff]
        %v1211 = vld [vmem:[#allocation10 + $0x60] sm:$0xff]
        %v1212 = vld [vmem:[#allocation10 + $0x68] sm:$0xff]
        %v1213 = vld [vmem:[#allocation10 + $0x70] sm:$0xff]
        %v1214 = vld [vmem:[#allocation10 + $0x78] sm:$0xff]
        %v1215 = vld [vmem:[%s10] sm:$0x1]
        %v1217 = vlaneseq
        %v1218 = vshrl.u32 %v1217, 7
        %v1219 = vsub.s32 0, %v1218
        %v1220 = vrot.slane %v1215, %v1219
        %1222 = vmatprep.subr.mxu0 0.0
        %1223 = vmatpush1.msra.mxu0 %v1214
        %1224 = vmatprep.subr.mxu0 0.0
        %1225 = vmatpush1.msra.mxu0 %v1213
        %1226 = vmatprep.subr.mxu0 0.0
        %1227 = vmatpush1.msra.mxu0 %v1212
        %1228 = vmatprep.subr.mxu0 0.0
        %1229 = vmatpush1.msra.mxu0 %v1211
        %1230 = vmatprep.subr.mxu0 0.0
        %1231 = vmatpush1.msra.mxu0 %v1210
        %1232 = vmatprep.subr.mxu0 0.0
        %1233 = vmatpush1.msra.mxu0 %v1209
        %1234 = vmatprep.subr.mxu0 0.0
        %1235 = vmatpush1.msra.mxu0 %v1208
        %1236 = vmatprep.subr.mxu0 0.0
        %1237 = vmatpush1.msra.mxu0 %v1207
        %1238 = vmatprep.subr.mxu0 0.0
        %1239 = vmatpush1.msra.mxu0 %v1206
        %1240 = vmatprep.subr.mxu0 0.0
        %1241 = vmatpush1.msra.mxu0 %v1205
        %1242 = vmatprep.subr.mxu0 0.0
        %1243 = vmatpush1.msra.mxu0 %v1204
        %1244 = vmatprep.subr.mxu0 0.0
        %1245 = vmatpush1.msra.mxu0 %v1203
        %1246 = vmatprep.subr.mxu0 0.0
        %1247 = vmatpush1.msra.mxu0 %v1202
        %1248 = vmatprep.subr.mxu0 0.0
        %1249 = vmatpush1.msra.mxu0 %v1201
        %1250 = vmatprep.subr.mxu0 0.0
        %1251 = vmatpush1.msra.mxu0 %v1200
        %1252 = vmatprep.subr.mxu0 0.0
        %1253 = vmatpush1.msra.mxu0 %v1199
        %1254 = vmatprep.subr.mxu0 0.0
        %1255 = vmatpush2.msra.mxu0 0.0
        %1256 = vmatprep.subr.mxu0 0.0
        %1257 = vmatpush2.msra.mxu0 0.0
        %1258 = vmatprep.subr.mxu0 0.0
        %1259 = vmatpush2.msra.mxu0 0.0
        %1260 = vmatprep.subr.mxu0 0.0
        %1261 = vmatpush2.msra.mxu0 0.0
        %1262 = vmatprep.subr.mxu0 0.0
        %1263 = vmatpush2.msra.mxu0 0.0
        %1264 = vmatprep.subr.mxu0 0.0
        %1265 = vmatpush2.msra.mxu0 0.0
        %1266 = vmatprep.subr.mxu0 0.0
        %1267 = vmatpush2.msra.mxu0 0.0
        %1268 = vmatprep.subr.mxu0 0.0
        %1269 = vmatpush2.msra.mxu0 0.0
        %1270 = vmatprep.subr.mxu0 0.0
        %1271 = vmatpush2.msra.mxu0 0.0
        %1272 = vmatprep.subr.mxu0 0.0
        %1273 = vmatpush2.msra.mxu0 0.0
        %1274 = vmatprep.subr.mxu0 0.0
        %1275 = vmatpush2.msra.mxu0 0.0
        %1276 = vmatprep.subr.mxu0 0.0
        %1277 = vmatpush2.msra.mxu0 0.0
        %1278 = vmatprep.subr.mxu0 0.0
        %1279 = vmatpush2.msra.mxu0 0.0
        %1280 = vmatprep.subr.mxu0 0.0
        %1281 = vmatpush2.msra.mxu0 0.0
        %1282 = vmatprep.subr.mxu0 0.0
        %1283 = vmatpush2.msra.mxu0 0.0
        %1284 = vmatprep.subr.mxu0 0.0
        %1285 = vmatpush2.msra.mxu0 0.0
        %1286 = vmatprep.mubr.f32.mxu0 0.0
        %1287 = vmatmul.mubr.f32.gmra.mxu0 %v1186
        %v1288 = vpop.f32.mrf.mxu0
        %v1289 = vadd.f32 %v1220, %v1288
        %v1290 = vpop.f32.mrf.mxu0
        %1291 = vmatprep.mubr.f32.mxu0 0.0
        %1292 = vmatmul.mubr.f32.gmra.mxu0 %v1187
        %v1293 = vpop.f32.mrf.mxu0
        %v1294 = vadd.f32 %v1220, %v1293
        %v1295 = vpop.f32.mrf.mxu0
        %1296 = vmatprep.mubr.f32.mxu0 0.0
        %1297 = vmatmul.mubr.f32.gmra.mxu0 %v1188
        %v1298 = vpop.f32.mrf.mxu0
        %v1299 = vadd.f32 %v1220, %v1298
        %v1300 = vpop.f32.mrf.mxu0
        %1301 = vmatprep.mubr.f32.mxu0 0.0
        %1302 = vmatmul.mubr.f32.gmra.mxu0 %v1189
        %v1303 = vpop.f32.mrf.mxu0
        %v1304 = vadd.f32 %v1220, %v1303
        %v1305 = vpop.f32.mrf.mxu0
        %1306 = vmatprep.mubr.f32.mxu0 0.0
        %1307 = vmatmul.mubr.f32.gmra.mxu0 %v1190
        %v1308 = vpop.f32.mrf.mxu0
        %v1309 = vadd.f32 %v1220, %v1308
        %v1310 = vpop.f32.mrf.mxu0
        %1311 = vmatprep.mubr.f32.mxu0 0.0
        %1312 = vmatmul.mubr.f32.gmra.mxu0 %v1191
        %v1313 = vpop.f32.mrf.mxu0
        %v1314 = vadd.f32 %v1220, %v1313
        %v1315 = vpop.f32.mrf.mxu0
        %1316 = vmatprep.mubr.f32.mxu0 0.0
        %1317 = vmatmul.mubr.f32.gmra.mxu0 %v1192
        %v1318 = vpop.f32.mrf.mxu0
        %v1319 = vadd.f32 %v1220, %v1318
        %v1320 = vpop.f32.mrf.mxu0
        %1321 = vmatprep.mubr.f32.mxu0 0.0
        %1322 = vmatmul.mubr.f32.gmra.mxu0 %v1193
        %v1323 = vpop.f32.mrf.mxu0
        %v1324 = vadd.f32 %v1220, %v1323
        %v1325 = vpop.f32.mrf.mxu0
        %1326 = vmatprep.mubr.f32.mxu0 0.0
        %1327 = vmatmul.mubr.f32.gmra.mxu0 %v1194
        %v1328 = vpop.f32.mrf.mxu0
        %v1329 = vadd.f32 %v1220, %v1328
        %v1330 = vpop.f32.mrf.mxu0
        %1331 = vmatprep.mubr.f32.mxu0 0.0
        %1332 = vmatmul.mubr.f32.gmra.mxu0 %v1195
        %v1333 = vpop.f32.mrf.mxu0
        %v1334 = vadd.f32 %v1220, %v1333
        %v1335 = vpop.f32.mrf.mxu0
        %1336 = vmatprep.mubr.f32.mxu0 0.0
        %1337 = vmatmul.mubr.f32.gmra.mxu0 %v1196
        %v1338 = vpop.f32.mrf.mxu0
        %v1339 = vadd.f32 %v1220, %v1338
        %v1340 = vpop.f32.mrf.mxu0
        %1341 = vmatprep.mubr.f32.mxu0 0.0
        %1342 = vmatmul.mubr.f32.gmra.mxu0 %v1197
        %v1343 = vpop.f32.mrf.mxu0
        %v1344 = vadd.f32 %v1220, %v1343
        %v1345 = vpop.f32.mrf.mxu0
        %1346 = vmatprep.mubr.f32.mxu0 0.0
        %1347 = vmatmul.mubr.f32.gmra.mxu0 %v1198
        %v1348 = vpop.f32.mrf.mxu0
        %v1349 = vadd.f32 %v1220, %v1348
        %v1350 = vpop.f32.mrf.mxu0
        %1351 = vdwg.mxu0
        %vm1352 = vcmask 7168
        %1353 = vst.msk [vmem:[%s481] sm:$0xff] %vm1352, %v1289
        %1354 = vst.msk [vmem:[%s481 + $0x8] sm:$0xff] %vm1352, %v1294
        %1355 = vst.msk [vmem:[%s481 + $0x10] sm:$0xff] %vm1352, %v1299
        %1356 = vst.msk [vmem:[%s481 + $0x18] sm:$0xff] %vm1352, %v1304
        %1357 = vst.msk [vmem:[%s481 + $0x20] sm:$0xff] %vm1352, %v1309
        %1358 = vst.msk [vmem:[%s481 + $0x28] sm:$0xff] %vm1352, %v1314
        %1359 = vst.msk [vmem:[%s481 + $0x30] sm:$0xff] %vm1352, %v1319
        %1360 = vst.msk [vmem:[%s481 + $0x38] sm:$0xff] %vm1352, %v1324
        %1361 = vst.msk [vmem:[%s481 + $0x40] sm:$0xff] %vm1352, %v1329
        %1362 = vst.msk [vmem:[%s481 + $0x48] sm:$0xff] %vm1352, %v1334
        %1363 = vst.msk [vmem:[%s481 + $0x50] sm:$0xff] %vm1352, %v1339
        %1364 = vst.msk [vmem:[%s481 + $0x58] sm:$0xff] %vm1352, %v1344
        %1365 = vst.msk [vmem:[%s481 + $0x60] sm:$0xff] %vm1352, %v1349
        %s1366 = sand.u32 %s272, 1
        %s1367 = sand.u32 %s272, 1
        %s1368 = smul.addr %s1367, 104
        %s1369 = scalar_lea.vmem [#allocation12], %s1368
        // Predicated region
        $region89: #{tpu_custom_call.1} parent=63 // pred_check
          %p1370 = pneg %p282
        $region90: #{tpu_custom_call.1} parent=63 // pred_check_branch
          %1372 = sbr.rel (%p1370) target = $region92
        $region91: #{tpu_custom_call.1} parent=63 // pred_region
          %s1373 = smul.u32 13, %s28
          %s1374 = ssub.s32 25, %s1373
          %p1375 = scmp.lt.s32.totalorder %s1374, 13
          %s1376 = scalar_select %p1375, %s1374, 13
          %s1377 = smul.u32 128, %s1376
          %p1378 = scmp.ne.s32.totalorder 0, %s1377
          %s1379 = smul.addr %s1373, 8
          %s1380 = scalar_lea.vmem %s11, %s1379
          // Predicated region
          $region93: #{tpu_custom_call.1} parent=91 // pred_check
            %p1381 = pneg %p1378
          $region94: #{tpu_custom_call.1} parent=91 // pred_check_branch
            %1383 = sbr.rel (%p1381) target = $region96
          $region95: #{tpu_custom_call.1} parent=91 // pred_region
            // Predicated region
            $region97: #{tpu_custom_call.1} parent=95 // pred_check
              _
            $region98: #{tpu_custom_call.1} parent=95 // pred_check_branch
              %1385 = sbr.rel (0) target = $region100
            $region99: #{tpu_custom_call.1} parent=95 // pred_region
              // Predicated region
              $region119: #{tpu_custom_call.1} parent=99 // pred_check
                _
              $region120: #{tpu_custom_call.1} parent=99 // pred_check_branch
                %1460 = sbr.rel (0) target = $region122
              $region121: #{tpu_custom_call.1} parent=99 // pred_region
                %s1461 = sdiv.u32.pop %s1376, 13
                %s1462 = srem.u32.pop %s1376, 13
                // While loop
                $region123: #{tpu_custom_call.1} parent=121 // loop_pre_header
                  _
                $region124: #{tpu_custom_call.1} parent=121 // loop_header
                  %s1464 = sphi 0, %s1466
                  %p1465 = scmp.ge.s32.totalorder %s1464, %s1461
                  %s1469 = sphi 0, %s1500
                  %s1470 = sphi %s1369, %s1503
                  %s1471 = sphi %s1380, %s1504
                $region125: #{tpu_custom_call.1} parent=121 // loop_header_branch
                  %1468 = sbr.rel (%p1465) target = $region129
                $region126: #{tpu_custom_call.1} parent=121 // loop_body
                  %v1472 = vld [vmem:[%s1470] sm:$0xff]
                  %1473 = vst [vmem:[%s1471] sm:$0xff] %v1472
                  %v1474 = vld [vmem:[%s1470 + $0x8] sm:$0xff]
                  %1475 = vst [vmem:[%s1471 + $0x8] sm:$0xff] %v1474
                  %v1476 = vld [vmem:[%s1470 + $0x10] sm:$0xff]
                  %1477 = vst [vmem:[%s1471 + $0x10] sm:$0xff] %v1476
                  %v1478 = vld [vmem:[%s1470 + $0x18] sm:$0xff]
                  %1479 = vst [vmem:[%s1471 + $0x18] sm:$0xff] %v1478
                  %v1480 = vld [vmem:[%s1470 + $0x20] sm:$0xff]
                  %1481 = vst [vmem:[%s1471 + $0x20] sm:$0xff] %v1480
                  %v1482 = vld [vmem:[%s1470 + $0x28] sm:$0xff]
                  %1483 = vst [vmem:[%s1471 + $0x28] sm:$0xff] %v1482
                  %v1484 = vld [vmem:[%s1470 + $0x30] sm:$0xff]
                  %1485 = vst [vmem:[%s1471 + $0x30] sm:$0xff] %v1484
                  %v1486 = vld [vmem:[%s1470 + $0x38] sm:$0xff]
                  %1487 = vst [vmem:[%s1471 + $0x38] sm:$0xff] %v1486
                  %v1488 = vld [vmem:[%s1470 + $0x40] sm:$0xff]
                  %1489 = vst [vmem:[%s1471 + $0x40] sm:$0xff] %v1488
                  %v1490 = vld [vmem:[%s1470 + $0x48] sm:$0xff]
                  %1491 = vst [vmem:[%s1471 + $0x48] sm:$0xff] %v1490
                  %v1492 = vld [vmem:[%s1470 + $0x50] sm:$0xff]
                  %1493 = vst [vmem:[%s1471 + $0x50] sm:$0xff] %v1492
                  %v1494 = vld [vmem:[%s1470 + $0x58] sm:$0xff]
                  %1495 = vst [vmem:[%s1471 + $0x58] sm:$0xff] %v1494
                  %v1496 = vld [vmem:[%s1470 + $0x60] sm:$0xff]
                  %1497 = vst [vmem:[%s1471 + $0x60] sm:$0xff] %v1496
                  %s1498 = sadd.s32 1, %s1469
                  %p1499 = scmp.ge.s32.totalorder %s1498, %s1461
                  %s1500 = scalar_select %p1499, 0, %s1498
                  %s1501 = smul.u32 %s1500, 104
                  %s1502 = smul.u32 %s1500, 104
                  %s1503 = scalar_lea.vmem %s1369, %s1501 [#allocation12]
                  %s1504 = scalar_lea.vmem %s1380, %s1502
                $region127: #{tpu_custom_call.1} parent=121 // loop_footer
                  %s1466 = sadd.s32 %s1464, 1
                $region128: #{tpu_custom_call.1} parent=121 // loop_footer_branch
                  %1463 = sbr.rel target = $region124
                $region129: #{tpu_custom_call.1} parent=121 // loop_exit
                  _
                %s1505 = sdiv.u32.pop %s1376, 13
                %s1506 = srem.u32.pop %s1376, 13
                %s1507 = smul.u32 %s1505, 13
                %s1508 = smul.u32 8, %s1507
                %s1509 = scalar_lea.vmem %s1369, %s1508 [#allocation12]
                %s1510 = smul.u32 8, %s1507
                %s1511 = scalar_lea.vmem %s1380, %s1510
                // While loop
                $region130: #{tpu_custom_call.1} parent=121 // loop_pre_header
                  _
                $region131: #{tpu_custom_call.1} parent=121 // loop_header
                  %s1513 = sphi 0, %s1515
                  %p1514 = scmp.ge.s32.totalorder %s1513, %s1506
                  %s1518 = sphi 0, %s1525
                  %s1519 = sphi %s1509, %s1528
                  %s1520 = sphi %s1511, %s1529
                $region132: #{tpu_custom_call.1} parent=121 // loop_header_branch
                  %1517 = sbr.rel (%p1514) target = $region136
                $region133: #{tpu_custom_call.1} parent=121 // loop_body
                  %v1521 = vld [vmem:[%s1519] sm:$0xff]
                  %1522 = vst [vmem:[%s1520] sm:$0xff] %v1521
                  %s1523 = sadd.s32 1, %s1518
                  %p1524 = scmp.ge.s32.totalorder %s1523, %s1506
                  %s1525 = scalar_select %p1524, 0, %s1523
                  %s1526 = smul.u32 %s1525, 8
                  %s1527 = smul.u32 %s1525, 8
                  %s1528 = scalar_lea.vmem %s1509, %s1526 [#allocation12]
                  %s1529 = scalar_lea.vmem %s1511, %s1527
                $region134: #{tpu_custom_call.1} parent=121 // loop_footer
                  %s1515 = sadd.s32 %s1513, 1
                $region135: #{tpu_custom_call.1} parent=121 // loop_footer_branch
                  %1512 = sbr.rel target = $region131
                $region136: #{tpu_custom_call.1} parent=121 // loop_exit
                  _
              $region122: #{tpu_custom_call.1} parent=99 // pred_fallthru
                _
              // Predicated region
              $region137: #{tpu_custom_call.1} parent=99 // pred_check
                _
              $region138: #{tpu_custom_call.1} parent=99 // pred_check_branch
                %1531 = sbr.rel target = $region140
              $region139: #{tpu_custom_call.1} parent=99 // pred_region
                _
              $region140: #{tpu_custom_call.1} parent=99 // pred_fallthru
                _
            $region100: #{tpu_custom_call.1} parent=95 // pred_fallthru
              _
            // Predicated region
            $region101: #{tpu_custom_call.1} parent=95 // pred_check
              _
            $region102: #{tpu_custom_call.1} parent=95 // pred_check_branch
              %1387 = sbr.rel target = $region104
            $region103: #{tpu_custom_call.1} parent=95 // pred_region
              %s1389 = ssub.s32 256, 1
              %s1390 = sdiv.u32.pop %s1376, 13
              %s1391 = srem.u32.pop %s1376, 13
              // While loop
              $region105: #{tpu_custom_call.1} parent=103 // loop_pre_header
                _
              $region106: #{tpu_custom_call.1} parent=103 // loop_header
                %s1393 = sphi 0, %s1395
                %p1394 = scmp.ge.s32.totalorder %s1393, %s1390
                %s1398 = sphi 0, %s1429
                %s1399 = sphi %s1369, %s1432
                %s1400 = sphi %s1380, %s1433
              $region107: #{tpu_custom_call.1} parent=103 // loop_header_branch
                %1397 = sbr.rel (%p1394) target = $region111
              $region108: #{tpu_custom_call.1} parent=103 // loop_body
                %v1401 = vld [vmem:[%s1399] sm:%s1389]
                %1402 = vst [vmem:[%s1400] sm:%s1389] %v1401
                %v1403 = vld [vmem:[%s1399 + $0x8] sm:%s1389]
                %1404 = vst [vmem:[%s1400 + $0x8] sm:%s1389] %v1403
                %v1405 = vld [vmem:[%s1399 + $0x10] sm:%s1389]
                %1406 = vst [vmem:[%s1400 + $0x10] sm:%s1389] %v1405
                %v1407 = vld [vmem:[%s1399 + $0x18] sm:%s1389]
                %1408 = vst [vmem:[%s1400 + $0x18] sm:%s1389] %v1407
                %v1409 = vld [vmem:[%s1399 + $0x20] sm:%s1389]
                %1410 = vst [vmem:[%s1400 + $0x20] sm:%s1389] %v1409
                %v1411 = vld [vmem:[%s1399 + $0x28] sm:%s1389]
                %1412 = vst [vmem:[%s1400 + $0x28] sm:%s1389] %v1411
                %v1413 = vld [vmem:[%s1399 + $0x30] sm:%s1389]
                %1414 = vst [vmem:[%s1400 + $0x30] sm:%s1389] %v1413
                %v1415 = vld [vmem:[%s1399 + $0x38] sm:%s1389]
                %1416 = vst [vmem:[%s1400 + $0x38] sm:%s1389] %v1415
                %v1417 = vld [vmem:[%s1399 + $0x40] sm:%s1389]
                %1418 = vst [vmem:[%s1400 + $0x40] sm:%s1389] %v1417
                %v1419 = vld [vmem:[%s1399 + $0x48] sm:%s1389]
                %1420 = vst [vmem:[%s1400 + $0x48] sm:%s1389] %v1419
                %v1421 = vld [vmem:[%s1399 + $0x50] sm:%s1389]
                %1422 = vst [vmem:[%s1400 + $0x50] sm:%s1389] %v1421
                %v1423 = vld [vmem:[%s1399 + $0x58] sm:%s1389]
                %1424 = vst [vmem:[%s1400 + $0x58] sm:%s1389] %v1423
                %v1425 = vld [vmem:[%s1399 + $0x60] sm:%s1389]
                %1426 = vst [vmem:[%s1400 + $0x60] sm:%s1389] %v1425
                %s1427 = sadd.s32 1, %s1398
                %p1428 = scmp.ge.s32.totalorder %s1427, %s1390
                %s1429 = scalar_select %p1428, 0, %s1427
                %s1430 = smul.u32 %s1429, 104
                %s1431 = smul.u32 %s1429, 104
                %s1432 = scalar_lea.vmem %s1369, %s1430 [#allocation12]
                %s1433 = scalar_lea.vmem %s1380, %s1431
              $region109: #{tpu_custom_call.1} parent=103 // loop_footer
                %s1395 = sadd.s32 %s1393, 1
              $region110: #{tpu_custom_call.1} parent=103 // loop_footer_branch
                %1392 = sbr.rel target = $region106
              $region111: #{tpu_custom_call.1} parent=103 // loop_exit
                _
              %s1434 = sdiv.u32.pop %s1376, 13
              %s1435 = srem.u32.pop %s1376, 13
              %s1436 = smul.u32 %s1434, 13
              %s1437 = smul.u32 8, %s1436
              %s1438 = scalar_lea.vmem %s1369, %s1437 [#allocation12]
              %s1439 = smul.u32 8, %s1436
              %s1440 = scalar_lea.vmem %s1380, %s1439
              // While loop
              $region112: #{tpu_custom_call.1} parent=103 // loop_pre_header
                _
              $region113: #{tpu_custom_call.1} parent=103 // loop_header
                %s1442 = sphi 0, %s1444
                %p1443 = scmp.ge.s32.totalorder %s1442, %s1435
                %s1447 = sphi 0, %s1454
                %s1448 = sphi %s1438, %s1457
                %s1449 = sphi %s1440, %s1458
              $region114: #{tpu_custom_call.1} parent=103 // loop_header_branch
                %1446 = sbr.rel (%p1443) target = $region118
              $region115: #{tpu_custom_call.1} parent=103 // loop_body
                %v1450 = vld [vmem:[%s1448] sm:%s1389]
                %1451 = vst [vmem:[%s1449] sm:%s1389] %v1450
                %s1452 = sadd.s32 1, %s1447
                %p1453 = scmp.ge.s32.totalorder %s1452, %s1435
                %s1454 = scalar_select %p1453, 0, %s1452
                %s1455 = smul.u32 %s1454, 8
                %s1456 = smul.u32 %s1454, 8
                %s1457 = scalar_lea.vmem %s1438, %s1455 [#allocation12]
                %s1458 = scalar_lea.vmem %s1440, %s1456
              $region116: #{tpu_custom_call.1} parent=103 // loop_footer
                %s1444 = sadd.s32 %s1442, 1
              $region117: #{tpu_custom_call.1} parent=103 // loop_footer_branch
                %1441 = sbr.rel target = $region113
              $region118: #{tpu_custom_call.1} parent=103 // loop_exit
                _
            $region104: #{tpu_custom_call.1} parent=95 // pred_fallthru
              _
          $region96: #{tpu_custom_call.1} parent=91 // pred_fallthru
            _
          %1532 = vnop
        $region92: #{tpu_custom_call.1} parent=63 // pred_fallthru
          _
      $region64: #{tpu_custom_call.1} parent=5 // pred_fallthru
        _
      %p1533 = scmp.le.s32.totalorder 2, %s23
      // Predicated region
      $region141: #{tpu_custom_call.1} parent=5 // pred_check
        %p1534 = pneg %p1533
      $region142: #{tpu_custom_call.1} parent=5 // pred_check_branch
        %1536 = sbr.rel (%p1534) target = $region144
      $region143: #{tpu_custom_call.1} parent=5 // pred_region
        %s1537 = ssub.s32 %s23, 2
        // Predicated region
        $region145: #{tpu_custom_call.1} parent=143 // pred_check
          %p1538 = pneg %p288
        $region146: #{tpu_custom_call.1} parent=143 // pred_check_branch
          %1540 = sbr.rel (%p1538) target = $region148
        $region147: #{tpu_custom_call.1} parent=143 // pred_region
          %s1541 = sand.u32 %s273, 1
          %s1542 = sand.u32 %s273, 1
          %s1543 = smul.addr %s1542, 104
          %s1544 = scalar_lea.vmem [#allocation12], %s1543
        $region148: #{tpu_custom_call.1} parent=143 // pred_fallthru
          _
      $region144: #{tpu_custom_call.1} parent=5 // pred_fallthru
        _
    $region6: #{tpu_custom_call.1} parent=1 // loop_footer
      %s27 = sadd.s32 1, %s23
    $region7: #{tpu_custom_call.1} parent=1 // loop_footer_branch
      %22 = sbr.rel target = $region3
    $region8: #{tpu_custom_call.1} parent=1 // loop_exit
      _
    %1545 = vsyncpa [#allocation3], 1
    %s1546 = scalar_lea.sflag [#allocation3], 1
    %1547 = vsyncpa %s1546, 1
    %1548 = vsyncpa [#allocation5], 1
    %1549 = vsyncpa [#allocation8], 1
    %1550 = vsyncpa [#allocation11], 1

</llo_original>
